<compile_context>
chip_gen: v6e
topology: v6e:2x2x1
jax: 0.10.0
libtpu: 0.0.40
codegen_flags: <defaults>
</compile_context>

<pallas_src>
import jax
import jax.numpy as jnp
from jax import lax
from jax.experimental import pallas as pl
from jax.experimental.pallas import tpu as pltpu

# ----------------------- small synthetic "config" -----------------------
VOCAB = 256
HIDDEN = 128
N_HEADS = 4
N_KV_HEADS = 2
HEAD_DIM = HIDDEN // N_HEADS          # 32
GROUP = N_HEADS // N_KV_HEADS         # GQA group size
Q_WIDTH = N_HEADS * HEAD_DIM          # 128
KV_WIDTH = N_KV_HEADS * HEAD_DIM      # 64
INTER = 256
N_LAYERS = 2
SEQ = 8
EPS = 1e-5
ROPE_THETA = 10000.0
SCALE = HEAD_DIM ** -0.5


# ----------------------------- fused kernel -----------------------------
def _fused_model_kernel(
    x_ref,                                   # (S, H) input embeddings
    cos_q_ref, sin_q_ref,                    # (S, Q_WIDTH) per-head tiled RoPE tables
    cos_k_ref, sin_k_ref,                    # (S, KV_WIDTH)
    rot_q_ref, rot_k_ref,                    # block-diag rotate_half matrices
    ln1_ref, wq_ref, wk_ref, wv_ref, wo_ref, # per-layer attention params
    ln2_ref, wg_ref, wu_ref, wd_ref,         # per-layer MLP params
    lnf_ref,                                 # final RMSNorm weight (1, H)
    out_ref,                                 # (S, H) final hidden states
    h_scr, r_scr,                            # VMEM scratch: hidden / residual
):
    layer = pl.program_id(0)

    # layer 0: residual starts at 0 so the unified "x = hidden + residual"
    # below reproduces vLLM's `residual = hidden; hidden = ln_1(hidden)`.
    @pl.when(layer == 0)
    def _init():
        h_scr[...] = x_ref[...]
        r_scr[...] = jnp.zeros_like(r_scr)

    def rms(x, w):
        var = jnp.mean(x * x, axis=-1, keepdims=True)
        return x * lax.rsqrt(var + EPS) * w

    # ---------------- ln_1 (fused residual add + RMSNorm) ----------------
    x = h_scr[...] + r_scr[...]
    r_scr[...] = x
    h1 = rms(x, ln1_ref[...])

    # ------------------------- QKV projections ---------------------------
    q = jnp.dot(h1, wq_ref[...], preferred_element_type=jnp.float32)   # (S, 128)
    k = jnp.dot(h1, wk_ref[...], preferred_element_type=jnp.float32)   # (S, 64)
    v = jnp.dot(h1, wv_ref[...], preferred_element_type=jnp.float32)   # (S, 64)

    # ---------------- neox-style RoPE, all heads at once ------------------
    # rotate_half(x) = x @ R where R is block-diag per head with the sign
    # baked in, so the lane shuffle rides the MXU instead of the XLU.
    q = q * cos_q_ref[...] + jnp.dot(
        q, rot_q_ref[...], preferred_element_type=jnp.float32) * sin_q_ref[...]
    k = k * cos_k_ref[...] + jnp.dot(
        k, rot_k_ref[...], preferred_element_type=jnp.float32) * sin_k_ref[...]

    # --------------- causal GQA attention (dense, no KV cache) -----------
    row = lax.broadcasted_iota(jnp.int32, (SEQ, SEQ), 0)
    col = lax.broadcasted_iota(jnp.int32, (SEQ, SEQ), 1)
    causal = col <= row                      # hoisted out of the head loop

    head_outs = []
    for h in range(N_HEADS):                 # static unroll, tiny per-head work
        kv = h // GROUP
        qh = q[:, h * HEAD_DIM:(h + 1) * HEAD_DIM]            # (S, D)
        kh = k[:, kv * HEAD_DIM:(kv + 1) * HEAD_DIM]          # (S, D)
        vh = v[:, kv * HEAD_DIM:(kv + 1) * HEAD_DIM]          # (S, D)
        # contract on the last dims -> no materialized k transpose
        s = lax.dot_general(qh, kh, (((1,), (1,)), ((), ())),
                            preferred_element_type=jnp.float32) * SCALE
        s = jnp.where(causal, s, -1e30)
        s = s - jnp.max(s, axis=-1, keepdims=True)
        p = jnp.exp(s)
        p = p / jnp.sum(p, axis=-1, keepdims=True)
        head_outs.append(jnp.dot(p, vh, preferred_element_type=jnp.float32))
    attn = jnp.concatenate(head_outs, axis=-1)                # lane-dense (S, 128)

    attn_h = jnp.dot(attn, wo_ref[...], preferred_element_type=jnp.float32)

    # ---------------- ln_2 (fused residual add + RMSNorm) ----------------
    x2 = attn_h + r_scr[...]
    r_scr[...] = x2
    h2 = rms(x2, ln2_ref[...])

    # --------------------- gated MLP (SiLU(g) * u) @ Wd -------------------
    g = jnp.dot(h2, wg_ref[...], preferred_element_type=jnp.float32)
    u = jnp.dot(h2, wu_ref[...], preferred_element_type=jnp.float32)
    mlp = jnp.dot(g * jax.nn.sigmoid(g) * u, wd_ref[...],
                  preferred_element_type=jnp.float32)
    h_scr[...] = mlp

    # ------------------- final RMSNorm after last layer -------------------
    @pl.when(layer == pl.num_programs(0) - 1)
    def _final():
        out_ref[...] = rms(mlp + x2, lnf_ref[...])


# ------------------------------ JAX glue ------------------------------
def rope_tables(positions):
    """Per-head tiled neox RoPE cos/sin tables for the full q / k widths."""
    half = HEAD_DIM // 2
    inv_freq = 1.0 / (ROPE_THETA ** (jnp.arange(half, dtype=jnp.float32) * 2.0 / HEAD_DIM))
    freqs = positions.astype(jnp.float32)[:, None] * inv_freq[None, :]   # (S, half)
    cos = jnp.concatenate([jnp.cos(freqs), jnp.cos(freqs)], axis=-1)     # (S, D)
    sin = jnp.concatenate([jnp.sin(freqs), jnp.sin(freqs)], axis=-1)     # (S, D)
    return (jnp.tile(cos, (1, N_HEADS)), jnp.tile(sin, (1, N_HEADS)),
            jnp.tile(cos, (1, N_KV_HEADS)), jnp.tile(sin, (1, N_KV_HEADS)))


def rotate_half_matrix(n_heads):
    """Block-diagonal matrix R so that  x @ R == rotate_half(x)  per head."""
    half = HEAD_DIM // 2
    blk = jnp.zeros((HEAD_DIM, HEAD_DIM), jnp.float32)
    blk = blk.at[jnp.arange(half), jnp.arange(half) + half].set(1.0)
    blk = blk.at[jnp.arange(half) + half, jnp.arange(half)].set(-1.0)
    return jnp.kron(jnp.eye(n_heads, dtype=jnp.float32), blk)


def exaone_forward(params, input_ids, positions):
    # TODO(synk): vocab embedding gather kept in plain JAX (no paged/TP embedding).
    hidden = params["wte"][input_ids]                          # (S, H)
    cos_q, sin_q, cos_k, sin_k = rope_tables(positions)
    rot_q = rotate_half_matrix(N_HEADS)
    rot_k = rotate_half_matrix(N_KV_HEADS)

    full = lambda shape: pl.BlockSpec(shape, lambda l: (0, 0))
    per_layer = lambda shape: pl.BlockSpec((None,) + shape, lambda l: (l, 0, 0))

    grid_spec = pltpu.PrefetchScalarGridSpec(
        num_scalar_prefetch=0,
        grid=(N_LAYERS,),
        in_specs=[
            full((SEQ, HIDDEN)),                 # embeddings
            full((SEQ, Q_WIDTH)),                # cos_q
            full((SEQ, Q_WIDTH)),                # sin_q
            full((SEQ, KV_WIDTH)),               # cos_k
            full((SEQ, KV_WIDTH)),               # sin_k
            full((Q_WIDTH, Q_WIDTH)),            # rot_q
            full((KV_WIDTH, KV_WIDTH)),          # rot_k
            per_layer((1, HIDDEN)),              # ln_1
            per_layer((HIDDEN, Q_WIDTH)),        # w_q
            per_layer((HIDDEN, KV_WIDTH)),       # w_k
            per_layer((HIDDEN, KV_WIDTH)),       # w_v
            per_layer((Q_WIDTH, HIDDEN)),        # w_out
            per_layer((1, HIDDEN)),              # ln_2
            per_layer((HIDDEN, INTER)),          # w_gate
            per_layer((HIDDEN, INTER)),          # w_up
            per_layer((INTER, HIDDEN)),          # w_down
            full((1, HIDDEN)),                   # ln_f
        ],
        out_specs=pl.BlockSpec((SEQ, HIDDEN), lambda l: (0, 0)),
        scratch_shapes=[pltpu.VMEM((SEQ, HIDDEN), jnp.float32),   # hidden carry
                        pltpu.VMEM((SEQ, HIDDEN), jnp.float32)],  # residual carry
    )

    return pl.pallas_call(
        _fused_model_kernel,
        out_shape=jax.ShapeDtypeStruct((SEQ, HIDDEN), jnp.float32),
        grid_spec=grid_spec,
        compiler_params=pltpu.CompilerParams(
            dimension_semantics=("arbitrary",)),   # layer loop carries state
    )(hidden, cos_q, sin_q, cos_k, sin_k, rot_q, rot_k,
      params["ln_1"], params["w_q"], params["w_k"], params["w_v"],
      params["w_out"], params["ln_2"], params["w_gate"], params["w_up"],
      params["w_down"], params["ln_f"])


def init_params(key):
    k_emb, k_w = jax.random.split(key)
    ks = jax.random.split(k_w, 7)

    def w(k, shape):
        return 0.02 * jax.random.normal(k, (N_LAYERS,) + shape, jnp.float32)

    return {
        "wte": 0.02 * jax.random.normal(k_emb, (VOCAB, HIDDEN), jnp.float32),
        "ln_f": jnp.ones((1, HIDDEN), jnp.float32),
        "ln_1": jnp.ones((N_LAYERS, 1, HIDDEN), jnp.float32),
        "ln_2": jnp.ones((N_LAYERS, 1, HIDDEN), jnp.float32),
        "w_q": w(ks[0], (HIDDEN, Q_WIDTH)),      # qkv_proj (q shard)
        "w_k": w(ks[1], (HIDDEN, KV_WIDTH)),     # qkv_proj (k shard)
        "w_v": w(ks[2], (HIDDEN, KV_WIDTH)),     # qkv_proj (v shard)
        "w_out": w(ks[3], (Q_WIDTH, HIDDEN)),    # out_proj
        "w_gate": w(ks[4], (HIDDEN, INTER)),     # gate_up_proj (gate shard)
        "w_up": w(ks[5], (HIDDEN, INTER)),       # gate_up_proj (up shard)
        "w_down": w(ks[6], (INTER, HIDDEN)),     # c_proj
    }


if __name__ == "__main__":
    params = init_params(jax.random.PRNGKey(0))
    input_ids = jax.random.randint(jax.random.PRNGKey(1), (SEQ,), 0, VOCAB,
                                   dtype=jnp.int32)
    positions = jnp.arange(SEQ, dtype=jnp.int32)

    out = exaone_forward(params, input_ids, positions)
    jax.block_until_ready(out)
    assert out.shape == (SEQ, HIDDEN) and out.dtype == jnp.float32
    assert bool(jnp.all(jnp.isfinite(out)))
    print("KERNEL_OK")
</pallas_src>

<mosaic_0001>
module attributes {stable_mosaic.version = 11 : i64} {
  func.func @_fused_model_kernel(%arg0: i32, %arg1: memref<8x128xf32, #tpu.memory_space<vmem>>, %arg2: memref<8x128xf32, #tpu.memory_space<vmem>>, %arg3: memref<8x128xf32, #tpu.memory_space<vmem>>, %arg4: memref<8x64xf32, #tpu.memory_space<vmem>>, %arg5: memref<8x64xf32, #tpu.memory_space<vmem>>, %arg6: memref<128x128xf32, #tpu.memory_space<vmem>>, %arg7: memref<64x64xf32, #tpu.memory_space<vmem>>, %arg8: memref<1x1x128xf32, #tpu.memory_space<vmem>>, %arg9: memref<1x128x128xf32, #tpu.memory_space<vmem>>, %arg10: memref<1x128x64xf32, #tpu.memory_space<vmem>>, %arg11: memref<1x128x64xf32, #tpu.memory_space<vmem>>, %arg12: memref<1x128x128xf32, #tpu.memory_space<vmem>>, %arg13: memref<1x1x128xf32, #tpu.memory_space<vmem>>, %arg14: memref<1x128x256xf32, #tpu.memory_space<vmem>>, %arg15: memref<1x128x256xf32, #tpu.memory_space<vmem>>, %arg16: memref<1x256x128xf32, #tpu.memory_space<vmem>>, %arg17: memref<1x128xf32, #tpu.memory_space<vmem>>, %arg18: memref<8x128xf32, #tpu.memory_space<vmem>>, %arg19: memref<8x128xf32, #tpu.memory_space<vmem>>, %arg20: memref<8x128xf32, #tpu.memory_space<vmem>>) attributes {dimension_semantics = [#tpu.dimension_semantics<arbitrary>], iteration_bounds = array<i64: 2>, scalar_prefetch = 0 : i64, scratch_operands = 2 : i64, tpu.core_type = #tpu.core_type<tc>, window_params = [{pipeline_mode = #tpu.pipeline_mode<synchronous>, transform_indices = @transform_0, window_bounds = array<i64: 8, 128>}, {pipeline_mode = #tpu.pipeline_mode<synchronous>, transform_indices = @transform_1, window_bounds = array<i64: 8, 128>}, {pipeline_mode = #tpu.pipeline_mode<synchronous>, transform_indices = @transform_2, window_bounds = array<i64: 8, 128>}, {pipeline_mode = #tpu.pipeline_mode<synchronous>, transform_indices = @transform_3, window_bounds = array<i64: 8, 64>}, {pipeline_mode = #tpu.pipeline_mode<synchronous>, transform_indices = @transform_4, window_bounds = array<i64: 8, 64>}, {pipeline_mode = #tpu.pipeline_mode<synchronous>, transform_indices = @transform_5, window_bounds = array<i64: 128, 128>}, {pipeline_mode = #tpu.pipeline_mode<synchronous>, transform_indices = @transform_6, window_bounds = array<i64: 64, 64>}, {transform_indices = @transform_7, window_bounds = array<i64: 1, 1, 128>}, {transform_indices = @transform_8, window_bounds = array<i64: 1, 128, 128>}, {transform_indices = @transform_9, window_bounds = array<i64: 1, 128, 64>}, {transform_indices = @transform_10, window_bounds = array<i64: 1, 128, 64>}, {transform_indices = @transform_11, window_bounds = array<i64: 1, 128, 128>}, {transform_indices = @transform_12, window_bounds = array<i64: 1, 1, 128>}, {transform_indices = @transform_13, window_bounds = array<i64: 1, 128, 256>}, {transform_indices = @transform_14, window_bounds = array<i64: 1, 128, 256>}, {transform_indices = @transform_15, window_bounds = array<i64: 1, 256, 128>}, {pipeline_mode = #tpu.pipeline_mode<synchronous>, transform_indices = @transform_16, window_bounds = array<i64: 1, 128>}, {pipeline_mode = #tpu.pipeline_mode<synchronous>, transform_indices = @transform_17, window_bounds = array<i64: 8, 128>}]} {
    %c0_i32 = arith.constant 0 : i32
    %0 = arith.cmpi eq, %arg0, %c0_i32 : i32
    %1 = arith.extui %0 : i1 to i32
    %c0_i32_0 = arith.constant 0 : i32
    %2 = arith.cmpi ne, %1, %c0_i32_0 : i32
    scf.if %2 {
      %c0_91 = arith.constant 0 : index
      %c0_92 = arith.constant 0 : index
      %160 = vector.load %arg1[%c0_91, %c0_92] : memref<8x128xf32, #tpu.memory_space<vmem>>, vector<8x128xf32>
      %c0_93 = arith.constant 0 : index
      %c0_94 = arith.constant 0 : index
      %161 = vector.load %arg19[%c0_93, %c0_94] : memref<8x128xf32, #tpu.memory_space<vmem>>, vector<8x128xf32>
      tpu.vector_store %arg19[%c0_93, %c0_94], %160 {strides = array<i32>} : memref<8x128xf32, #tpu.memory_space<vmem>>, vector<8x128xf32>,
      %cst_95 = arith.constant 0.000000e+00 : f32
      %162 = vector.broadcast %cst_95 : f32 to vector<8x128xf32>
      %c0_96 = arith.constant 0 : index
      %c0_97 = arith.constant 0 : index
      %163 = vector.load %arg20[%c0_96, %c0_97] : memref<8x128xf32, #tpu.memory_space<vmem>>, vector<8x128xf32>
      tpu.vector_store %arg20[%c0_96, %c0_97], %162 {strides = array<i32>} : memref<8x128xf32, #tpu.memory_space<vmem>>, vector<8x128xf32>,
    } else {
    }
    %c0 = arith.constant 0 : index
    %c0_1 = arith.constant 0 : index
    %3 = vector.load %arg19[%c0, %c0_1] : memref<8x128xf32, #tpu.memory_space<vmem>>, vector<8x128xf32>
    %c0_2 = arith.constant 0 : index
    %c0_3 = arith.constant 0 : index
    %4 = vector.load %arg20[%c0_2, %c0_3] : memref<8x128xf32, #tpu.memory_space<vmem>>, vector<8x128xf32>
    %5 = arith.addf %3, %4 : vector<8x128xf32>
    %c0_4 = arith.constant 0 : index
    %c0_5 = arith.constant 0 : index
    %6 = vector.load %arg20[%c0_4, %c0_5] : memref<8x128xf32, #tpu.memory_space<vmem>>, vector<8x128xf32>
    tpu.vector_store %arg20[%c0_4, %c0_5], %5 {strides = array<i32>} : memref<8x128xf32, #tpu.memory_space<vmem>>, vector<8x128xf32>,
    %c0_6 = arith.constant 0 : index
    %c0_7 = arith.constant 0 : index
    %c0_8 = arith.constant 0 : index
    %7 = vector.load %arg8[%c0_6, %c0_7, %c0_8] : memref<1x1x128xf32, #tpu.memory_space<vmem>>, vector<1x1x128xf32>
    %8 = vector.shape_cast %7 : vector<1x1x128xf32> to vector<1x128xf32>
    %9 = arith.mulf %5, %5 : vector<8x128xf32>
    %cst = arith.constant dense<0.000000e+00> : vector<8xf32>
    %10 = vector.multi_reduction <add>, %9, %cst [1] : vector<8x128xf32> to vector<8xf32>
    %11 = vector.shape_cast %10 : vector<8xf32> to vector<8x1xf32>
    %cst_9 = arith.constant 1.280000e+02 : f32
    %12 = vector.broadcast %cst_9 : f32 to vector<8x1xf32>
    %13 = arith.divf %11, %12 : vector<8x1xf32>
    %cst_10 = arith.constant 9.99999974E-6 : f32
    %14 = vector.broadcast %cst_10 : f32 to vector<8x1xf32>
    %15 = arith.addf %13, %14 : vector<8x1xf32>
    %16 = math.rsqrt %15 : vector<8x1xf32>
    %17 = vector.broadcast %16 : vector<8x1xf32> to vector<8x128xf32>
    %18 = arith.mulf %5, %17 : vector<8x128xf32>
    %19 = vector.broadcast %8 : vector<1x128xf32> to vector<8x128xf32>
    %20 = arith.mulf %18, %19 : vector<8x128xf32>
    %c0_11 = arith.constant 0 : index
    %c0_12 = arith.constant 0 : index
    %c0_13 = arith.constant 0 : index
    %21 = vector.load %arg9[%c0_11, %c0_12, %c0_13] : memref<1x128x128xf32, #tpu.memory_space<vmem>>, vector<1x128x128xf32>
    %22 = vector.shape_cast %21 : vector<1x128x128xf32> to vector<128x128xf32>
    %cst_14 = arith.constant dense<0.000000e+00> : vector<8x128xf32>
    %23 = tpu.matmul %20, %22, %cst_14 {dimension_numbers = #tpu.dot_dimension_numbers<[1], [0], [0], [1], [0, 0, 1, 1], [], []>} : vector<8x128xf32>, vector<128x128xf32>, vector<8x128xf32> -> vector<8x128xf32>
    %c0_15 = arith.constant 0 : index
    %c0_16 = arith.constant 0 : index
    %c0_17 = arith.constant 0 : index
    %24 = vector.load %arg10[%c0_15, %c0_16, %c0_17] : memref<1x128x64xf32, #tpu.memory_space<vmem>>, vector<1x128x64xf32>
    %25 = vector.shape_cast %24 : vector<1x128x64xf32> to vector<128x64xf32>
    %cst_18 = arith.constant dense<0.000000e+00> : vector<8x64xf32>
    %26 = tpu.matmul %20, %25, %cst_18 {dimension_numbers = #tpu.dot_dimension_numbers<[1], [0], [0], [1], [0, 0, 1, 1], [], []>} : vector<8x128xf32>, vector<128x64xf32>, vector<8x64xf32> -> vector<8x64xf32>
    %c0_19 = arith.constant 0 : index
    %c0_20 = arith.constant 0 : index
    %c0_21 = arith.constant 0 : index
    %27 = vector.load %arg11[%c0_19, %c0_20, %c0_21] : memref<1x128x64xf32, #tpu.memory_space<vmem>>, vector<1x128x64xf32>
    %28 = vector.shape_cast %27 : vector<1x128x64xf32> to vector<128x64xf32>
    %cst_22 = arith.constant dense<0.000000e+00> : vector<8x64xf32>
    %29 = tpu.matmul %20, %28, %cst_22 {dimension_numbers = #tpu.dot_dimension_numbers<[1], [0], [0], [1], [0, 0, 1, 1], [], []>} : vector<8x128xf32>, vector<128x64xf32>, vector<8x64xf32> -> vector<8x64xf32>
    %c0_23 = arith.constant 0 : index
    %c0_24 = arith.constant 0 : index
    %30 = vector.load %arg2[%c0_23, %c0_24] : memref<8x128xf32, #tpu.memory_space<vmem>>, vector<8x128xf32>
    %31 = arith.mulf %23, %30 : vector<8x128xf32>
    %c0_25 = arith.constant 0 : index
    %c0_26 = arith.constant 0 : index
    %32 = vector.load %arg6[%c0_25, %c0_26] : memref<128x128xf32, #tpu.memory_space<vmem>>, vector<128x128xf32>
    %cst_27 = arith.constant dense<0.000000e+00> : vector<8x128xf32>
    %33 = tpu.matmul %23, %32, %cst_27 {dimension_numbers = #tpu.dot_dimension_numbers<[1], [0], [0], [1], [0, 0, 1, 1], [], []>} : vector<8x128xf32>, vector<128x128xf32>, vector<8x128xf32> -> vector<8x128xf32>
    %c0_28 = arith.constant 0 : index
    %c0_29 = arith.constant 0 : index
    %34 = vector.load %arg3[%c0_28, %c0_29] : memref<8x128xf32, #tpu.memory_space<vmem>>, vector<8x128xf32>
    %35 = arith.mulf %33, %34 : vector<8x128xf32>
    %36 = arith.addf %31, %35 : vector<8x128xf32>
    %c0_30 = arith.constant 0 : index
    %c0_31 = arith.constant 0 : index
    %37 = vector.load %arg4[%c0_30, %c0_31] : memref<8x64xf32, #tpu.memory_space<vmem>>, vector<8x64xf32>
    %38 = arith.mulf %26, %37 : vector<8x64xf32>
    %c0_32 = arith.constant 0 : index
    %c0_33 = arith.constant 0 : index
    %39 = vector.load %arg7[%c0_32, %c0_33] : memref<64x64xf32, #tpu.memory_space<vmem>>, vector<64x64xf32>
    %cst_34 = arith.constant dense<0.000000e+00> : vector<8x64xf32>
    %40 = tpu.matmul %26, %39, %cst_34 {dimension_numbers = #tpu.dot_dimension_numbers<[1], [0], [0], [1], [0, 0, 1, 1], [], []>} : vector<8x64xf32>, vector<64x64xf32>, vector<8x64xf32> -> vector<8x64xf32>
    %c0_35 = arith.constant 0 : index
    %c0_36 = arith.constant 0 : index
    %41 = vector.load %arg5[%c0_35, %c0_36] : memref<8x64xf32, #tpu.memory_space<vmem>>, vector<8x64xf32>
    %42 = arith.mulf %40, %41 : vector<8x64xf32>
    %43 = arith.addf %38, %42 : vector<8x64xf32>
    %44 = tpu.iota {dimensions = array<i32: 0>} : vector<8x8xi32>
    %45 = tpu.iota {dimensions = array<i32: 1>} : vector<8x8xi32>
    %46 = arith.cmpi sle, %45, %44 : vector<8x8xi32>
    %47 = vector.extract_strided_slice %36 {offsets = [0, 0], sizes = [8, 32], strides = [1, 1]} : vector<8x128xf32> to vector<8x32xf32>
    %48 = vector.extract_strided_slice %43 {offsets = [0, 0], sizes = [8, 32], strides = [1, 1]} : vector<8x64xf32> to vector<8x32xf32>
    %49 = vector.extract_strided_slice %29 {offsets = [0, 0], sizes = [8, 32], strides = [1, 1]} : vector<8x64xf32> to vector<8x32xf32>
    %cst_37 = arith.constant dense<0.000000e+00> : vector<8x8xf32>
    %50 = tpu.matmul %47, %48, %cst_37 {dimension_numbers = #tpu.dot_dimension_numbers<[1], [1], [0], [0], [0, 0, 1, 0], [], []>} : vector<8x32xf32>, vector<8x32xf32>, vector<8x8xf32> -> vector<8x8xf32>
    %cst_38 = arith.constant 0.176776692 : f32
    %51 = vector.broadcast %cst_38 : f32 to vector<8x8xf32>
    %52 = arith.mulf %50, %51 : vector<8x8xf32>
    %cst_39 = arith.constant -1.000000e+30 : f32
    %53 = vector.broadcast %cst_39 : f32 to vector<8x8xf32>
    %54 = arith.select %46, %52, %53 : vector<8x8xi1>, vector<8x8xf32>
    %cst_40 = arith.constant dense<0xFF800000> : vector<8xf32>
    %55 = vector.multi_reduction <maximumf>, %54, %cst_40 [1] : vector<8x8xf32> to vector<8xf32>
    %56 = vector.shape_cast %55 : vector<8xf32> to vector<8x1xf32>
    %57 = vector.broadcast %56 : vector<8x1xf32> to vector<8x8xf32>
    %58 = arith.subf %54, %57 : vector<8x8xf32>
    %59 = math.exp %58 : vector<8x8xf32>
    %cst_41 = arith.constant dense<0.000000e+00> : vector<8xf32>
    %60 = vector.multi_reduction <add>, %59, %cst_41 [1] : vector<8x8xf32> to vector<8xf32>
    %61 = vector.shape_cast %60 : vector<8xf32> to vector<8x1xf32>
    %62 = vector.broadcast %61 : vector<8x1xf32> to vector<8x8xf32>
    %63 = arith.divf %59, %62 : vector<8x8xf32>
    %cst_42 = arith.constant dense<0.000000e+00> : vector<8x32xf32>
    %64 = tpu.matmul %63, %49, %cst_42 {dimension_numbers = #tpu.dot_dimension_numbers<[1], [0], [0], [1], [0, 0, 1, 1], [], []>} : vector<8x8xf32>, vector<8x32xf32>, vector<8x32xf32> -> vector<8x32xf32>
    %65 = vector.extract_strided_slice %36 {offsets = [0, 32], sizes = [8, 32], strides = [1, 1]} : vector<8x128xf32> to vector<8x32xf32>
    %66 = vector.extract_strided_slice %43 {offsets = [0, 0], sizes = [8, 32], strides = [1, 1]} : vector<8x64xf32> to vector<8x32xf32>
    %67 = vector.extract_strided_slice %29 {offsets = [0, 0], sizes = [8, 32], strides = [1, 1]} : vector<8x64xf32> to vector<8x32xf32>
    %cst_43 = arith.constant dense<0.000000e+00> : vector<8x8xf32>
    %68 = tpu.matmul %65, %66, %cst_43 {dimension_numbers = #tpu.dot_dimension_numbers<[1], [1], [0], [0], [0, 0, 1, 0], [], []>} : vector<8x32xf32>, vector<8x32xf32>, vector<8x8xf32> -> vector<8x8xf32>
    %cst_44 = arith.constant 0.176776692 : f32
    %69 = vector.broadcast %cst_44 : f32 to vector<8x8xf32>
    %70 = arith.mulf %68, %69 : vector<8x8xf32>
    %cst_45 = arith.constant -1.000000e+30 : f32
    %71 = vector.broadcast %cst_45 : f32 to vector<8x8xf32>
    %72 = arith.select %46, %70, %71 : vector<8x8xi1>, vector<8x8xf32>
    %cst_46 = arith.constant dense<0xFF800000> : vector<8xf32>
    %73 = vector.multi_reduction <maximumf>, %72, %cst_46 [1] : vector<8x8xf32> to vector<8xf32>
    %74 = vector.shape_cast %73 : vector<8xf32> to vector<8x1xf32>
    %75 = vector.broadcast %74 : vector<8x1xf32> to vector<8x8xf32>
    %76 = arith.subf %72, %75 : vector<8x8xf32>
    %77 = math.exp %76 : vector<8x8xf32>
    %cst_47 = arith.constant dense<0.000000e+00> : vector<8xf32>
    %78 = vector.multi_reduction <add>, %77, %cst_47 [1] : vector<8x8xf32> to vector<8xf32>
    %79 = vector.shape_cast %78 : vector<8xf32> to vector<8x1xf32>
    %80 = vector.broadcast %79 : vector<8x1xf32> to vector<8x8xf32>
    %81 = arith.divf %77, %80 : vector<8x8xf32>
    %cst_48 = arith.constant dense<0.000000e+00> : vector<8x32xf32>
    %82 = tpu.matmul %81, %67, %cst_48 {dimension_numbers = #tpu.dot_dimension_numbers<[1], [0], [0], [1], [0, 0, 1, 1], [], []>} : vector<8x8xf32>, vector<8x32xf32>, vector<8x32xf32> -> vector<8x32xf32>
    %83 = vector.extract_strided_slice %36 {offsets = [0, 64], sizes = [8, 32], strides = [1, 1]} : vector<8x128xf32> to vector<8x32xf32>
    %84 = vector.extract_strided_slice %43 {offsets = [0, 32], sizes = [8, 32], strides = [1, 1]} : vector<8x64xf32> to vector<8x32xf32>
    %85 = vector.extract_strided_slice %29 {offsets = [0, 32], sizes = [8, 32], strides = [1, 1]} : vector<8x64xf32> to vector<8x32xf32>
    %cst_49 = arith.constant dense<0.000000e+00> : vector<8x8xf32>
    %86 = tpu.matmul %83, %84, %cst_49 {dimension_numbers = #tpu.dot_dimension_numbers<[1], [1], [0], [0], [0, 0, 1, 0], [], []>} : vector<8x32xf32>, vector<8x32xf32>, vector<8x8xf32> -> vector<8x8xf32>
    %cst_50 = arith.constant 0.176776692 : f32
    %87 = vector.broadcast %cst_50 : f32 to vector<8x8xf32>
    %88 = arith.mulf %86, %87 : vector<8x8xf32>
    %cst_51 = arith.constant -1.000000e+30 : f32
    %89 = vector.broadcast %cst_51 : f32 to vector<8x8xf32>
    %90 = arith.select %46, %88, %89 : vector<8x8xi1>, vector<8x8xf32>
    %cst_52 = arith.constant dense<0xFF800000> : vector<8xf32>
    %91 = vector.multi_reduction <maximumf>, %90, %cst_52 [1] : vector<8x8xf32> to vector<8xf32>
    %92 = vector.shape_cast %91 : vector<8xf32> to vector<8x1xf32>
    %93 = vector.broadcast %92 : vector<8x1xf32> to vector<8x8xf32>
    %94 = arith.subf %90, %93 : vector<8x8xf32>
    %95 = math.exp %94 : vector<8x8xf32>
    %cst_53 = arith.constant dense<0.000000e+00> : vector<8xf32>
    %96 = vector.multi_reduction <add>, %95, %cst_53 [1] : vector<8x8xf32> to vector<8xf32>
    %97 = vector.shape_cast %96 : vector<8xf32> to vector<8x1xf32>
    %98 = vector.broadcast %97 : vector<8x1xf32> to vector<8x8xf32>
    %99 = arith.divf %95, %98 : vector<8x8xf32>
    %cst_54 = arith.constant dense<0.000000e+00> : vector<8x32xf32>
    %100 = tpu.matmul %99, %85, %cst_54 {dimension_numbers = #tpu.dot_dimension_numbers<[1], [0], [0], [1], [0, 0, 1, 1], [], []>} : vector<8x8xf32>, vector<8x32xf32>, vector<8x32xf32> -> vector<8x32xf32>
    %101 = vector.extract_strided_slice %36 {offsets = [0, 96], sizes = [8, 32], strides = [1, 1]} : vector<8x128xf32> to vector<8x32xf32>
    %102 = vector.extract_strided_slice %43 {offsets = [0, 32], sizes = [8, 32], strides = [1, 1]} : vector<8x64xf32> to vector<8x32xf32>
    %103 = vector.extract_strided_slice %29 {offsets = [0, 32], sizes = [8, 32], strides = [1, 1]} : vector<8x64xf32> to vector<8x32xf32>
    %cst_55 = arith.constant dense<0.000000e+00> : vector<8x8xf32>
    %104 = tpu.matmul %101, %102, %cst_55 {dimension_numbers = #tpu.dot_dimension_numbers<[1], [1], [0], [0], [0, 0, 1, 0], [], []>} : vector<8x32xf32>, vector<8x32xf32>, vector<8x8xf32> -> vector<8x8xf32>
    %cst_56 = arith.constant 0.176776692 : f32
    %105 = vector.broadcast %cst_56 : f32 to vector<8x8xf32>
    %106 = arith.mulf %104, %105 : vector<8x8xf32>
    %cst_57 = arith.constant -1.000000e+30 : f32
    %107 = vector.broadcast %cst_57 : f32 to vector<8x8xf32>
    %108 = arith.select %46, %106, %107 : vector<8x8xi1>, vector<8x8xf32>
    %cst_58 = arith.constant dense<0xFF800000> : vector<8xf32>
    %109 = vector.multi_reduction <maximumf>, %108, %cst_58 [1] : vector<8x8xf32> to vector<8xf32>
    %110 = vector.shape_cast %109 : vector<8xf32> to vector<8x1xf32>
    %111 = vector.broadcast %110 : vector<8x1xf32> to vector<8x8xf32>
    %112 = arith.subf %108, %111 : vector<8x8xf32>
    %113 = math.exp %112 : vector<8x8xf32>
    %cst_59 = arith.constant dense<0.000000e+00> : vector<8xf32>
    %114 = vector.multi_reduction <add>, %113, %cst_59 [1] : vector<8x8xf32> to vector<8xf32>
    %115 = vector.shape_cast %114 : vector<8xf32> to vector<8x1xf32>
    %116 = vector.broadcast %115 : vector<8x1xf32> to vector<8x8xf32>
    %117 = arith.divf %113, %116 : vector<8x8xf32>
    %cst_60 = arith.constant dense<0.000000e+00> : vector<8x32xf32>
    %118 = tpu.matmul %117, %103, %cst_60 {dimension_numbers = #tpu.dot_dimension_numbers<[1], [0], [0], [1], [0, 0, 1, 1], [], []>} : vector<8x8xf32>, vector<8x32xf32>, vector<8x32xf32> -> vector<8x32xf32>
    %119 = tpu.concatenate %64, %82, %100, %118 in 1 : vector<8x32xf32>, vector<8x32xf32>, vector<8x32xf32>, vector<8x32xf32> -> vector<8x128xf32>
    %c0_61 = arith.constant 0 : index
    %c0_62 = arith.constant 0 : index
    %c0_63 = arith.constant 0 : index
    %120 = vector.load %arg12[%c0_61, %c0_62, %c0_63] : memref<1x128x128xf32, #tpu.memory_space<vmem>>, vector<1x128x128xf32>
    %121 = vector.shape_cast %120 : vector<1x128x128xf32> to vector<128x128xf32>
    %cst_64 = arith.constant dense<0.000000e+00> : vector<8x128xf32>
    %122 = tpu.matmul %119, %121, %cst_64 {dimension_numbers = #tpu.dot_dimension_numbers<[1], [0], [0], [1], [0, 0, 1, 1], [], []>} : vector<8x128xf32>, vector<128x128xf32>, vector<8x128xf32> -> vector<8x128xf32>
    %c0_65 = arith.constant 0 : index
    %c0_66 = arith.constant 0 : index
    %123 = vector.load %arg20[%c0_65, %c0_66] : memref<8x128xf32, #tpu.memory_space<vmem>>, vector<8x128xf32>
    %124 = arith.addf %122, %123 : vector<8x128xf32>
    %c0_67 = arith.constant 0 : index
    %c0_68 = arith.constant 0 : index
    %125 = vector.load %arg20[%c0_67, %c0_68] : memref<8x128xf32, #tpu.memory_space<vmem>>, vector<8x128xf32>
    tpu.vector_store %arg20[%c0_67, %c0_68], %124 {strides = array<i32>} : memref<8x128xf32, #tpu.memory_space<vmem>>, vector<8x128xf32>,
    %c0_69 = arith.constant 0 : index
    %c0_70 = arith.constant 0 : index
    %c0_71 = arith.constant 0 : index
    %126 = vector.load %arg13[%c0_69, %c0_70, %c0_71] : memref<1x1x128xf32, #tpu.memory_space<vmem>>, vector<1x1x128xf32>
    %127 = vector.shape_cast %126 : vector<1x1x128xf32> to vector<1x128xf32>
    %128 = arith.mulf %124, %124 : vector<8x128xf32>
    %cst_72 = arith.constant dense<0.000000e+00> : vector<8xf32>
    %129 = vector.multi_reduction <add>, %128, %cst_72 [1] : vector<8x128xf32> to vector<8xf32>
    %130 = vector.shape_cast %129 : vector<8xf32> to vector<8x1xf32>
    %cst_73 = arith.constant 1.280000e+02 : f32
    %131 = vector.broadcast %cst_73 : f32 to vector<8x1xf32>
    %132 = arith.divf %130, %131 : vector<8x1xf32>
    %cst_74 = arith.constant 9.99999974E-6 : f32
    %133 = vector.broadcast %cst_74 : f32 to vector<8x1xf32>
    %134 = arith.addf %132, %133 : vector<8x1xf32>
    %135 = math.rsqrt %134 : vector<8x1xf32>
    %136 = vector.broadcast %135 : vector<8x1xf32> to vector<8x128xf32>
    %137 = arith.mulf %124, %136 : vector<8x128xf32>
    %138 = vector.broadcast %127 : vector<1x128xf32> to vector<8x128xf32>
    %139 = arith.mulf %137, %138 : vector<8x128xf32>
    %c0_75 = arith.constant 0 : index
    %c0_76 = arith.constant 0 : index
    %c0_77 = arith.constant 0 : index
    %140 = vector.load %arg14[%c0_75, %c0_76, %c0_77] : memref<1x128x256xf32, #tpu.memory_space<vmem>>, vector<1x128x256xf32>
    %141 = vector.shape_cast %140 : vector<1x128x256xf32> to vector<128x256xf32>
    %cst_78 = arith.constant dense<0.000000e+00> : vector<8x256xf32>
    %142 = tpu.matmul %139, %141, %cst_78 {dimension_numbers = #tpu.dot_dimension_numbers<[1], [0], [0], [1], [0, 0, 1, 1], [], []>} : vector<8x128xf32>, vector<128x256xf32>, vector<8x256xf32> -> vector<8x256xf32>
    %c0_79 = arith.constant 0 : index
    %c0_80 = arith.constant 0 : index
    %c0_81 = arith.constant 0 : index
    %143 = vector.load %arg15[%c0_79, %c0_80, %c0_81] : memref<1x128x256xf32, #tpu.memory_space<vmem>>, vector<1x128x256xf32>
    %144 = vector.shape_cast %143 : vector<1x128x256xf32> to vector<128x256xf32>
    %cst_82 = arith.constant dense<0.000000e+00> : vector<8x256xf32>
    %145 = tpu.matmul %139, %144, %cst_82 {dimension_numbers = #tpu.dot_dimension_numbers<[1], [0], [0], [1], [0, 0, 1, 1], [], []>} : vector<8x128xf32>, vector<128x256xf32>, vector<8x256xf32> -> vector<8x256xf32>
    %146 = arith.negf %142 : vector<8x256xf32>
    %147 = math.exp %146 : vector<8x256xf32>
    %cst_83 = arith.constant 1.000000e+00 : f32
    %148 = vector.broadcast %cst_83 : f32 to vector<8x256xf32>
    %149 = arith.addf %148, %147 : vector<8x256xf32>
    %150 = arith.divf %148, %149 : vector<8x256xf32>
    %151 = arith.mulf %142, %150 : vector<8x256xf32>
    %152 = arith.mulf %151, %145 : vector<8x256xf32>
    %c0_84 = arith.constant 0 : index
    %c0_85 = arith.constant 0 : index
    %c0_86 = arith.constant 0 : index
    %153 = vector.load %arg16[%c0_84, %c0_85, %c0_86] : memref<1x256x128xf32, #tpu.memory_space<vmem>>, vector<1x256x128xf32>
    %154 = vector.shape_cast %153 : vector<1x256x128xf32> to vector<256x128xf32>
    %cst_87 = arith.constant dense<0.000000e+00> : vector<8x128xf32>
    %155 = tpu.matmul %152, %154, %cst_87 {dimension_numbers = #tpu.dot_dimension_numbers<[1], [0], [0], [1], [0, 0, 1, 1], [], []>} : vector<8x256xf32>, vector<256x128xf32>, vector<8x128xf32> -> vector<8x128xf32>
    %c0_88 = arith.constant 0 : index
    %c0_89 = arith.constant 0 : index
    %156 = vector.load %arg19[%c0_88, %c0_89] : memref<8x128xf32, #tpu.memory_space<vmem>>, vector<8x128xf32>
    tpu.vector_store %arg19[%c0_88, %c0_89], %155 {strides = array<i32>} : memref<8x128xf32, #tpu.memory_space<vmem>>, vector<8x128xf32>,
    %c1_i32 = arith.constant 1 : i32
    %157 = arith.cmpi eq, %arg0, %c1_i32 : i32
    %158 = arith.extui %157 : i1 to i32
    %c0_i32_90 = arith.constant 0 : i32
    %159 = arith.cmpi ne, %158, %c0_i32_90 : i32
    scf.if %159 {
      %160 = arith.addf %155, %124 : vector<8x128xf32>
      %c0_91 = arith.constant 0 : index
      %c0_92 = arith.constant 0 : index
      %161 = vector.load %arg17[%c0_91, %c0_92] : memref<1x128xf32, #tpu.memory_space<vmem>>, vector<1x128xf32>
      %162 = arith.mulf %160, %160 : vector<8x128xf32>
      %cst_93 = arith.constant dense<0.000000e+00> : vector<8xf32>
      %163 = vector.multi_reduction <add>, %162, %cst_93 [1] : vector<8x128xf32> to vector<8xf32>
      %164 = vector.shape_cast %163 : vector<8xf32> to vector<8x1xf32>
      %cst_94 = arith.constant 1.280000e+02 : f32
      %165 = vector.broadcast %cst_94 : f32 to vector<8x1xf32>
      %166 = arith.divf %164, %165 : vector<8x1xf32>
      %cst_95 = arith.constant 9.99999974E-6 : f32
      %167 = vector.broadcast %cst_95 : f32 to vector<8x1xf32>
      %168 = arith.addf %166, %167 : vector<8x1xf32>
      %169 = math.rsqrt %168 : vector<8x1xf32>
      %170 = vector.broadcast %169 : vector<8x1xf32> to vector<8x128xf32>
      %171 = arith.mulf %160, %170 : vector<8x128xf32>
      %172 = vector.broadcast %161 : vector<1x128xf32> to vector<8x128xf32>
      %173 = arith.mulf %171, %172 : vector<8x128xf32>
      %c0_96 = arith.constant 0 : index
      %c0_97 = arith.constant 0 : index
      %174 = vector.load %arg18[%c0_96, %c0_97] : memref<8x128xf32, #tpu.memory_space<vmem>>, vector<8x128xf32>
      tpu.vector_store %arg18[%c0_96, %c0_97], %173 {strides = array<i32>} : memref<8x128xf32, #tpu.memory_space<vmem>>, vector<8x128xf32>,
    } else {
    }
    return
  }
  func.func @transform_0(%arg0: i32) -> (i32, i32) {
    %c0_i32 = arith.constant 0 : i32
    %c0_i32_0 = arith.constant 0 : i32
    %c0_i32_1 = arith.constant 0 : i32
    return %c0_i32, %c0_i32_0 : i32, i32
  }
  func.func @transform_1(%arg0: i32) -> (i32, i32) {
    %c0_i32 = arith.constant 0 : i32
    %c0_i32_0 = arith.constant 0 : i32
    %c0_i32_1 = arith.constant 0 : i32
    return %c0_i32, %c0_i32_0 : i32, i32
  }
  func.func @transform_2(%arg0: i32) -> (i32, i32) {
    %c0_i32 = arith.constant 0 : i32
    %c0_i32_0 = arith.constant 0 : i32
    %c0_i32_1 = arith.constant 0 : i32
    return %c0_i32, %c0_i32_0 : i32, i32
  }
  func.func @transform_3(%arg0: i32) -> (i32, i32) {
    %c0_i32 = arith.constant 0 : i32
    %c0_i32_0 = arith.constant 0 : i32
    %c0_i32_1 = arith.constant 0 : i32
    return %c0_i32, %c0_i32_0 : i32, i32
  }
  func.func @transform_4(%arg0: i32) -> (i32, i32) {
    %c0_i32 = arith.constant 0 : i32
    %c0_i32_0 = arith.constant 0 : i32
    %c0_i32_1 = arith.constant 0 : i32
    return %c0_i32, %c0_i32_0 : i32, i32
  }
  func.func @transform_5(%arg0: i32) -> (i32, i32) {
    %c0_i32 = arith.constant 0 : i32
    %c0_i32_0 = arith.constant 0 : i32
    %c0_i32_1 = arith.constant 0 : i32
    return %c0_i32, %c0_i32_0 : i32, i32
  }
  func.func @transform_6(%arg0: i32) -> (i32, i32) {
    %c0_i32 = arith.constant 0 : i32
    %c0_i32_0 = arith.constant 0 : i32
    %c0_i32_1 = arith.constant 0 : i32
    return %c0_i32, %c0_i32_0 : i32, i32
  }
  func.func @transform_7(%arg0: i32) -> (i32, i32, i32) {
    %c0_i32 = arith.constant 0 : i32
    %c0_i32_0 = arith.constant 0 : i32
    %c0_i32_1 = arith.constant 0 : i32
    return %arg0, %c0_i32, %c0_i32_0 : i32, i32, i32
  }
  func.func @transform_8(%arg0: i32) -> (i32, i32, i32) {
    %c0_i32 = arith.constant 0 : i32
    %c0_i32_0 = arith.constant 0 : i32
    %c0_i32_1 = arith.constant 0 : i32
    return %arg0, %c0_i32, %c0_i32_0 : i32, i32, i32
  }
  func.func @transform_9(%arg0: i32) -> (i32, i32, i32) {
    %c0_i32 = arith.constant 0 : i32
    %c0_i32_0 = arith.constant 0 : i32
    %c0_i32_1 = arith.constant 0 : i32
    return %arg0, %c0_i32, %c0_i32_0 : i32, i32, i32
  }
  func.func @transform_10(%arg0: i32) -> (i32, i32, i32) {
    %c0_i32 = arith.constant 0 : i32
    %c0_i32_0 = arith.constant 0 : i32
    %c0_i32_1 = arith.constant 0 : i32
    return %arg0, %c0_i32, %c0_i32_0 : i32, i32, i32
  }
  func.func @transform_11(%arg0: i32) -> (i32, i32, i32) {
    %c0_i32 = arith.constant 0 : i32
    %c0_i32_0 = arith.constant 0 : i32
    %c0_i32_1 = arith.constant 0 : i32
    return %arg0, %c0_i32, %c0_i32_0 : i32, i32, i32
  }
  func.func @transform_12(%arg0: i32) -> (i32, i32, i32) {
    %c0_i32 = arith.constant 0 : i32
    %c0_i32_0 = arith.constant 0 : i32
    %c0_i32_1 = arith.constant 0 : i32
    return %arg0, %c0_i32, %c0_i32_0 : i32, i32, i32
  }
  func.func @transform_13(%arg0: i32) -> (i32, i32, i32) {
    %c0_i32 = arith.constant 0 : i32
    %c0_i32_0 = arith.constant 0 : i32
    %c0_i32_1 = arith.constant 0 : i32
    return %arg0, %c0_i32, %c0_i32_0 : i32, i32, i32
  }
  func.func @transform_14(%arg0: i32) -> (i32, i32, i32) {
    %c0_i32 = arith.constant 0 : i32
    %c0_i32_0 = arith.constant 0 : i32
    %c0_i32_1 = arith.constant 0 : i32
    return %arg0, %c0_i32, %c0_i32_0 : i32, i32, i32
  }
  func.func @transform_15(%arg0: i32) -> (i32, i32, i32) {
    %c0_i32 = arith.constant 0 : i32
    %c0_i32_0 = arith.constant 0 : i32
    %c0_i32_1 = arith.constant 0 : i32
    return %arg0, %c0_i32, %c0_i32_0 : i32, i32, i32
  }
  func.func @transform_16(%arg0: i32) -> (i32, i32) {
    %c0_i32 = arith.constant 0 : i32
    %c0_i32_0 = arith.constant 0 : i32
    %c0_i32_1 = arith.constant 0 : i32
    return %c0_i32, %c0_i32_0 : i32, i32
  }
  func.func @transform_17(%arg0: i32) -> (i32, i32) {
    %c0_i32 = arith.constant 0 : i32
    %c0_i32_0 = arith.constant 0 : i32
    %c0_i32_1 = arith.constant 0 : i32
    return %c0_i32, %c0_i32_0 : i32, i32
  }
}

</mosaic_0001>

<llo_original>
// kernel: tpu_custom_call.1
$region0: #{tpu_custom_call.1}
  #allocation0 [shape = 'u32[]', space=smem, size = 0x4, offset = 0x4, fixed_abs, tag = 'smem constant byte address 0x4 - core index']
  #allocation1 [shape = 'u32[144,128]{1,0:T(1,128)}', space=vmem, size = 0x12000, scoped, tag = 'internal scratch']
  #allocation2 [shape = 'f32[8,128]{1,0:T(8,128)}', space=vmem, size = 0x1000, scoped, tag = 'scratch operand']
  #allocation3 [shape = 'f32[8,128]{1,0:T(8,128)}', space=vmem, size = 0x1000, scoped, tag = 'scratch operand']
  %s0 = inlined_call_operand.vmem [shape: f32[8,128], index: 0, kind: input, shape index: {}]
  %s1 = inlined_call_operand.vmem [shape: f32[8,128], index: 1, kind: input, shape index: {}]
  %s2 = inlined_call_operand.hbm [shape: f32[8,128], index: 2, kind: input, shape index: {}]
  %s3 = inlined_call_operand.hbm [shape: f32[8,64], index: 3, kind: input, shape index: {}]
  %s4 = inlined_call_operand.hbm [shape: f32[8,64], index: 4, kind: input, shape index: {}]
  %s5 = inlined_call_operand.hbm [shape: f32[128,128], index: 5, kind: input, shape index: {}]
  %s6 = inlined_call_operand.hbm [shape: f32[64,64], index: 6, kind: input, shape index: {}]
  %s7 = inlined_call_operand.vmem [shape: f32[2,1,128], index: 7, kind: input, shape index: {}]
  %s8 = inlined_call_operand.vmem [shape: f32[2,128,128], index: 8, kind: input, shape index: {}]
  %s9 = inlined_call_operand.vmem [shape: f32[2,128,64], index: 9, kind: input, shape index: {}]
  %s10 = inlined_call_operand.vmem [shape: f32[2,128,64], index: 10, kind: input, shape index: {}]
  %s11 = inlined_call_operand.hbm [shape: f32[2,128,128], index: 11, kind: input, shape index: {}]
  %s12 = inlined_call_operand.vmem [shape: f32[2,1,128], index: 12, kind: input, shape index: {}]
  %s13 = inlined_call_operand.vmem [shape: f32[2,128,256], index: 13, kind: input, shape index: {}]
  %s14 = inlined_call_operand.hbm [shape: f32[2,128,256], index: 14, kind: input, shape index: {}]
  %s15 = inlined_call_operand.hbm [shape: f32[2,256,128], index: 15, kind: input, shape index: {}]
  %s16 = inlined_call_operand.vmem [shape: f32[1,128], index: 16, kind: input, shape index: {}]
  %s17 = inlined_call_operand.hbm [shape: f32[8,128], index: 17, kind: output, shape index: {}]
  %s18 = sld [smem:[#allocation0]]
  $region141: #{tpu_custom_call.1} parent=0
    _
  %s20 = ssub.s32 1, %s18
  %s21 = scalar_select 0, %s20, %s18
  $region1: #{tpu_custom_call.1} parent=0
    #allocation4 [shape = 'u8[4096]{0}', space=vmem, size = 0x1000, scoped, tag = 'input window, operand 2, single buffered']
    #allocation5 [shape = 's32[2]{0}', space=sflag, size = 0x8, scoped, tag = 'scoped memory for tpu_custom_call.1']
    #allocation6 [shape = 's32[2]{0}', space=sflag, size = 0x8, scoped, tag = 'scoped memory for tpu_custom_call.1']
    #allocation7 [shape = 'u8[4096]{0}', space=vmem, size = 0x1000, scoped, tag = 'input window, operand 3, single buffered']
    #allocation8 [shape = 's32[1]{0}', space=sflag, size = 0x4, scoped, tag = 'scoped memory for tpu_custom_call.1']
    #allocation9 [shape = 'u8[4096]{0}', space=vmem, size = 0x1000, scoped, tag = 'input window, operand 4, single buffered']
    #allocation10 [shape = 'u8[65536]{0}', space=vmem, size = 0x10000, scoped, tag = 'input window, operand 5, single buffered']
    #allocation11 [shape = 's32[1]{0}', space=sflag, size = 0x4, scoped, tag = 'scoped memory for tpu_custom_call.1']
    #allocation12 [shape = 'u8[32768]{0}', space=vmem, size = 0x8000, scoped, tag = 'input window, operand 6, single buffered']
    #allocation13 [shape = 'u8[131072]{0}', space=vmem, size = 0x20000, scoped, tag = 'input window, operand 11']
    #allocation14 [shape = 's32[2]{0}', space=sflag, size = 0x8, scoped, tag = 'scoped memory for tpu_custom_call.1']
    #allocation15 [shape = 'u8[262144]{0}', space=vmem, size = 0x40000, scoped, tag = 'input window, operand 14']
    #allocation16 [shape = 'u8[262144]{0}', space=vmem, size = 0x40000, scoped, tag = 'input window, operand 15']
    #allocation17 [shape = 's32[2]{0}', space=sflag, size = 0x8, scoped, tag = 'scoped memory for tpu_custom_call.1']
    #allocation18 [shape = 'u8[4096]{0}', space=vmem, size = 0x1000, scoped, tag = 'output window, operand 0, single buffered']
    %22 = vsyncpa [#allocation5], 0
    %23 = vsyncpa [#allocation8], 0
    %24 = vsyncpa [#allocation11], 0
    %25 = vsyncpa [#allocation14], 0
    %s26 = scalar_lea.sflag [#allocation14], 1
    %27 = vsyncpa %s26, 0
    %28 = vsyncpa [#allocation17], 0
    %s29 = scalar_lea.sflag [#allocation17], 1
    %30 = vsyncpa %s29, 0
    %31 = vsyncpa [#allocation6], 0
    loop: start=0, step=1, limit=4
    $region2: #{tpu_custom_call.1} parent=1 // loop_pre_header
      _
    $region3: #{tpu_custom_call.1} parent=1 // loop_header
      %s33 = sphi 0, %s37
      %p34 = scmp.ge.s32.totalorder %s33, 4
      %s41 = sphi 0, %s41
      %s43 = sphi 0, %s41
      %s44 = sphi 0, %s43
      %s58 = sphi 0, %s44
      %s62 = sphi 0, %s62
      %s64 = sphi 0, %s62
      %s65 = sphi 0, %s64
      %s79 = sphi 0, %s65
      %s83 = sphi 0, %s83
      %s85 = sphi 0, %s83
      %s86 = sphi 0, %s85
      %s100 = sphi 0, %s86
      %s104 = sphi 0, %s104
      %s106 = sphi 0, %s104
      %s107 = sphi 0, %s106
      %s121 = sphi 0, %s107
      %s125 = sphi 0, %s125
      %s127 = sphi 0, %s125
      %s128 = sphi 0, %s127
      %s142 = sphi 0, %s128
      %s146 = sphi 0, %s146
      %s148 = sphi 0, %s146
      %s149 = sphi 0, %s148
      %s163 = sphi 0, %s149
      %s167 = sphi 0, %s167
      %s169 = sphi 0, %s167
      %s170 = sphi 0, %s169
      %s184 = sphi 0, %s170
      %s190 = sphi 0, %s192
      %s193 = sphi 0, %s190
      %s194 = sphi 0, %s193
      %s210 = sphi 0, %s194
      %s216 = sphi 0, %s218
      %s219 = sphi 0, %s216
      %s220 = sphi 0, %s219
      %s236 = sphi 0, %s220
      %s242 = sphi 0, %s244
      %s245 = sphi 0, %s242
      %s246 = sphi 0, %s245
      %s262 = sphi 0, %s246
      %s268 = sphi 0, %s270
      %s271 = sphi 0, %s268
      %s272 = sphi 0, %s271
      %s288 = sphi 0, %s272
      %s294 = sphi 0, %s296
      %s297 = sphi 0, %s294
      %s298 = sphi 0, %s297
      %s314 = sphi 0, %s298
      %s320 = sphi 0, %s322
      %s323 = sphi 0, %s320
      %s324 = sphi 0, %s323
      %s340 = sphi 0, %s324
      %s346 = sphi 0, %s348
      %s349 = sphi 0, %s346
      %s350 = sphi 0, %s349
      %s366 = sphi 0, %s350
      %s372 = sphi 0, %s374
      %s375 = sphi 0, %s372
      %s376 = sphi 0, %s375
      %s392 = sphi 0, %s376
      %s398 = sphi 0, %s400
      %s401 = sphi 0, %s398
      %s402 = sphi 0, %s401
      %s418 = sphi 0, %s402
      %s422 = sphi 0, %s422
      %s424 = sphi 0, %s422
      %s425 = sphi 0, %s424
      %s439 = sphi 0, %s425
      %s443 = sphi 0, %s443
      %s445 = sphi 0, %s443
      %s446 = sphi 0, %s445
      %s460 = sphi 0, %s446
    $region4: #{tpu_custom_call.1} parent=1 // loop_header_branch
      %36 = sbr.rel (%p34) target = $region8
    $region5: #{tpu_custom_call.1} parent=1 // loop_body
      %s38 = ssub.s32 %s33, 1
      %s39 = ssub.s32 %s33, 2
      %s40 = sadd.s32 %s33, 1
      %s42 = sadd.s32 %s41, 1
      %p45 = scmp.eq.s32.totalorder %s33, 1
      %p46 = scmp.ne.s32.totalorder %s41, %s43
      %p47 = scmp.eq.s32.totalorder %s33, 0
      %p48 = por %p46, %p47
      %p49 = scmp.ne.s32.totalorder %s41, %s43
      %p50 = scmp.eq.s32.totalorder %s38, 1
      %p51 = por %p49, %p50
      %p52 = scmp.ne.s32.totalorder %s43, %s44
      %p53 = scmp.eq.s32.totalorder %s38, 0
      %p54 = por %p52, %p53
      %p55 = scmp.ne.s32.totalorder %s43, %s44
      %p56 = scmp.eq.s32.totalorder %s39, 1
      %p57 = por %p55, %p56
      %p59 = scmp.ne.s32.totalorder %s44, %s58
      %p60 = scmp.eq.s32.totalorder %s39, 0
      %p61 = por %p59, %p60
      %s63 = sadd.s32 %s62, 1
      %p66 = scmp.eq.s32.totalorder %s33, 1
      %p67 = scmp.ne.s32.totalorder %s62, %s64
      %p68 = scmp.eq.s32.totalorder %s33, 0
      %p69 = por %p67, %p68
      %p70 = scmp.ne.s32.totalorder %s62, %s64
      %p71 = scmp.eq.s32.totalorder %s38, 1
      %p72 = por %p70, %p71
      %p73 = scmp.ne.s32.totalorder %s64, %s65
      %p74 = scmp.eq.s32.totalorder %s38, 0
      %p75 = por %p73, %p74
      %p76 = scmp.ne.s32.totalorder %s64, %s65
      %p77 = scmp.eq.s32.totalorder %s39, 1
      %p78 = por %p76, %p77
      %p80 = scmp.ne.s32.totalorder %s65, %s79
      %p81 = scmp.eq.s32.totalorder %s39, 0
      %p82 = por %p80, %p81
      %s84 = sadd.s32 %s83, 1
      %p87 = scmp.eq.s32.totalorder %s33, 1
      %p88 = scmp.ne.s32.totalorder %s83, %s85
      %p89 = scmp.eq.s32.totalorder %s33, 0
      %p90 = por %p88, %p89
      %p91 = scmp.ne.s32.totalorder %s83, %s85
      %p92 = scmp.eq.s32.totalorder %s38, 1
      %p93 = por %p91, %p92
      %p94 = scmp.ne.s32.totalorder %s85, %s86
      %p95 = scmp.eq.s32.totalorder %s38, 0
      %p96 = por %p94, %p95
      %p97 = scmp.ne.s32.totalorder %s85, %s86
      %p98 = scmp.eq.s32.totalorder %s39, 1
      %p99 = por %p97, %p98
      %p101 = scmp.ne.s32.totalorder %s86, %s100
      %p102 = scmp.eq.s32.totalorder %s39, 0
      %p103 = por %p101, %p102
      %s105 = sadd.s32 %s104, 1
      %p108 = scmp.eq.s32.totalorder %s33, 1
      %p109 = scmp.ne.s32.totalorder %s104, %s106
      %p110 = scmp.eq.s32.totalorder %s33, 0
      %p111 = por %p109, %p110
      %p112 = scmp.ne.s32.totalorder %s104, %s106
      %p113 = scmp.eq.s32.totalorder %s38, 1
      %p114 = por %p112, %p113
      %p115 = scmp.ne.s32.totalorder %s106, %s107
      %p116 = scmp.eq.s32.totalorder %s38, 0
      %p117 = por %p115, %p116
      %p118 = scmp.ne.s32.totalorder %s106, %s107
      %p119 = scmp.eq.s32.totalorder %s39, 1
      %p120 = por %p118, %p119
      %p122 = scmp.ne.s32.totalorder %s107, %s121
      %p123 = scmp.eq.s32.totalorder %s39, 0
      %p124 = por %p122, %p123
      %s126 = sadd.s32 %s125, 1
      %p129 = scmp.eq.s32.totalorder %s33, 1
      %p130 = scmp.ne.s32.totalorder %s125, %s127
      %p131 = scmp.eq.s32.totalorder %s33, 0
      %p132 = por %p130, %p131
      %p133 = scmp.ne.s32.totalorder %s125, %s127
      %p134 = scmp.eq.s32.totalorder %s38, 1
      %p135 = por %p133, %p134
      %p136 = scmp.ne.s32.totalorder %s127, %s128
      %p137 = scmp.eq.s32.totalorder %s38, 0
      %p138 = por %p136, %p137
      %p139 = scmp.ne.s32.totalorder %s127, %s128
      %p140 = scmp.eq.s32.totalorder %s39, 1
      %p141 = por %p139, %p140
      %p143 = scmp.ne.s32.totalorder %s128, %s142
      %p144 = scmp.eq.s32.totalorder %s39, 0
      %p145 = por %p143, %p144
      %s147 = sadd.s32 %s146, 1
      %p150 = scmp.eq.s32.totalorder %s33, 1
      %p151 = scmp.ne.s32.totalorder %s146, %s148
      %p152 = scmp.eq.s32.totalorder %s33, 0
      %p153 = por %p151, %p152
      %p154 = scmp.ne.s32.totalorder %s146, %s148
      %p155 = scmp.eq.s32.totalorder %s38, 1
      %p156 = por %p154, %p155
      %p157 = scmp.ne.s32.totalorder %s148, %s149
      %p158 = scmp.eq.s32.totalorder %s38, 0
      %p159 = por %p157, %p158
      %p160 = scmp.ne.s32.totalorder %s148, %s149
      %p161 = scmp.eq.s32.totalorder %s39, 1
      %p162 = por %p160, %p161
      %p164 = scmp.ne.s32.totalorder %s149, %s163
      %p165 = scmp.eq.s32.totalorder %s39, 0
      %p166 = por %p164, %p165
      %s168 = sadd.s32 %s167, 1
      %p171 = scmp.eq.s32.totalorder %s33, 1
      %p172 = scmp.ne.s32.totalorder %s167, %s169
      %p173 = scmp.eq.s32.totalorder %s33, 0
      %p174 = por %p172, %p173
      %p175 = scmp.ne.s32.totalorder %s167, %s169
      %p176 = scmp.eq.s32.totalorder %s38, 1
      %p177 = por %p175, %p176
      %p178 = scmp.ne.s32.totalorder %s169, %s170
      %p179 = scmp.eq.s32.totalorder %s38, 0
      %p180 = por %p178, %p179
      %p181 = scmp.ne.s32.totalorder %s169, %s170
      %p182 = scmp.eq.s32.totalorder %s39, 1
      %p183 = por %p181, %p182
      %p185 = scmp.ne.s32.totalorder %s170, %s184
      %p186 = scmp.eq.s32.totalorder %s39, 0
      %p187 = por %p185, %p186
      %s188 = ssub.s32 %s33, %s40
      %p189 = scmp.eq.s32.totalorder %s188, 0
      %s191 = sadd.s32 %s190, 1
      %s192 = scalar_select %p189, %s190, %s191
      %p195 = pneg %p189
      %p196 = scmp.eq.s32.totalorder %s33, 1
      %p197 = por %p195, %p196
      %p198 = scmp.ne.s32.totalorder %s190, %s193
      %p199 = scmp.eq.s32.totalorder %s33, 0
      %p200 = por %p198, %p199
      %p201 = scmp.ne.s32.totalorder %s190, %s193
      %p202 = scmp.eq.s32.totalorder %s38, 1
      %p203 = por %p201, %p202
      %p204 = scmp.ne.s32.totalorder %s193, %s194
      %p205 = scmp.eq.s32.totalorder %s38, 0
      %p206 = por %p204, %p205
      %p207 = scmp.ne.s32.totalorder %s193, %s194
      %p208 = scmp.eq.s32.totalorder %s39, 1
      %p209 = por %p207, %p208
      %p211 = scmp.ne.s32.totalorder %s194, %s210
      %p212 = scmp.eq.s32.totalorder %s39, 0
      %p213 = por %p211, %p212
      %s214 = ssub.s32 %s33, %s40
      %p215 = scmp.eq.s32.totalorder %s214, 0
      %s217 = sadd.s32 %s216, 1
      %s218 = scalar_select %p215, %s216, %s217
      %p221 = pneg %p215
      %p222 = scmp.eq.s32.totalorder %s33, 1
      %p223 = por %p221, %p222
      %p224 = scmp.ne.s32.totalorder %s216, %s219
      %p225 = scmp.eq.s32.totalorder %s33, 0
      %p226 = por %p224, %p225
      %p227 = scmp.ne.s32.totalorder %s216, %s219
      %p228 = scmp.eq.s32.totalorder %s38, 1
      %p229 = por %p227, %p228
      %p230 = scmp.ne.s32.totalorder %s219, %s220
      %p231 = scmp.eq.s32.totalorder %s38, 0
      %p232 = por %p230, %p231
      %p233 = scmp.ne.s32.totalorder %s219, %s220
      %p234 = scmp.eq.s32.totalorder %s39, 1
      %p235 = por %p233, %p234
      %p237 = scmp.ne.s32.totalorder %s220, %s236
      %p238 = scmp.eq.s32.totalorder %s39, 0
      %p239 = por %p237, %p238
      %s240 = ssub.s32 %s33, %s40
      %p241 = scmp.eq.s32.totalorder %s240, 0
      %s243 = sadd.s32 %s242, 1
      %s244 = scalar_select %p241, %s242, %s243
      %p247 = pneg %p241
      %p248 = scmp.eq.s32.totalorder %s33, 1
      %p249 = por %p247, %p248
      %p250 = scmp.ne.s32.totalorder %s242, %s245
      %p251 = scmp.eq.s32.totalorder %s33, 0
      %p252 = por %p250, %p251
      %p253 = scmp.ne.s32.totalorder %s242, %s245
      %p254 = scmp.eq.s32.totalorder %s38, 1
      %p255 = por %p253, %p254
      %p256 = scmp.ne.s32.totalorder %s245, %s246
      %p257 = scmp.eq.s32.totalorder %s38, 0
      %p258 = por %p256, %p257
      %p259 = scmp.ne.s32.totalorder %s245, %s246
      %p260 = scmp.eq.s32.totalorder %s39, 1
      %p261 = por %p259, %p260
      %p263 = scmp.ne.s32.totalorder %s246, %s262
      %p264 = scmp.eq.s32.totalorder %s39, 0
      %p265 = por %p263, %p264
      %s266 = ssub.s32 %s33, %s40
      %p267 = scmp.eq.s32.totalorder %s266, 0
      %s269 = sadd.s32 %s268, 1
      %s270 = scalar_select %p267, %s268, %s269
      %p273 = pneg %p267
      %p274 = scmp.eq.s32.totalorder %s33, 1
      %p275 = por %p273, %p274
      %p276 = scmp.ne.s32.totalorder %s268, %s271
      %p277 = scmp.eq.s32.totalorder %s33, 0
      %p278 = por %p276, %p277
      %p279 = scmp.ne.s32.totalorder %s268, %s271
      %p280 = scmp.eq.s32.totalorder %s38, 1
      %p281 = por %p279, %p280
      %p282 = scmp.ne.s32.totalorder %s271, %s272
      %p283 = scmp.eq.s32.totalorder %s38, 0
      %p284 = por %p282, %p283
      %p285 = scmp.ne.s32.totalorder %s271, %s272
      %p286 = scmp.eq.s32.totalorder %s39, 1
      %p287 = por %p285, %p286
      %p289 = scmp.ne.s32.totalorder %s272, %s288
      %p290 = scmp.eq.s32.totalorder %s39, 0
      %p291 = por %p289, %p290
      %s292 = ssub.s32 %s33, %s40
      %p293 = scmp.eq.s32.totalorder %s292, 0
      %s295 = sadd.s32 %s294, 1
      %s296 = scalar_select %p293, %s294, %s295
      %p299 = pneg %p293
      %p300 = scmp.eq.s32.totalorder %s33, 1
      %p301 = por %p299, %p300
      %p302 = scmp.ne.s32.totalorder %s294, %s297
      %p303 = scmp.eq.s32.totalorder %s33, 0
      %p304 = por %p302, %p303
      %p305 = scmp.ne.s32.totalorder %s294, %s297
      %p306 = scmp.eq.s32.totalorder %s38, 1
      %p307 = por %p305, %p306
      %p308 = scmp.ne.s32.totalorder %s297, %s298
      %p309 = scmp.eq.s32.totalorder %s38, 0
      %p310 = por %p308, %p309
      %p311 = scmp.ne.s32.totalorder %s297, %s298
      %p312 = scmp.eq.s32.totalorder %s39, 1
      %p313 = por %p311, %p312
      %p315 = scmp.ne.s32.totalorder %s298, %s314
      %p316 = scmp.eq.s32.totalorder %s39, 0
      %p317 = por %p315, %p316
      %s318 = ssub.s32 %s33, %s40
      %p319 = scmp.eq.s32.totalorder %s318, 0
      %s321 = sadd.s32 %s320, 1
      %s322 = scalar_select %p319, %s320, %s321
      %p325 = pneg %p319
      %p326 = scmp.eq.s32.totalorder %s33, 1
      %p327 = por %p325, %p326
      %p328 = scmp.ne.s32.totalorder %s320, %s323
      %p329 = scmp.eq.s32.totalorder %s33, 0
      %p330 = por %p328, %p329
      %p331 = scmp.ne.s32.totalorder %s320, %s323
      %p332 = scmp.eq.s32.totalorder %s38, 1
      %p333 = por %p331, %p332
      %p334 = scmp.ne.s32.totalorder %s323, %s324
      %p335 = scmp.eq.s32.totalorder %s38, 0
      %p336 = por %p334, %p335
      %p337 = scmp.ne.s32.totalorder %s323, %s324
      %p338 = scmp.eq.s32.totalorder %s39, 1
      %p339 = por %p337, %p338
      %p341 = scmp.ne.s32.totalorder %s324, %s340
      %p342 = scmp.eq.s32.totalorder %s39, 0
      %p343 = por %p341, %p342
      %s344 = ssub.s32 %s33, %s40
      %p345 = scmp.eq.s32.totalorder %s344, 0
      %s347 = sadd.s32 %s346, 1
      %s348 = scalar_select %p345, %s346, %s347
      %p351 = pneg %p345
      %p352 = scmp.eq.s32.totalorder %s33, 1
      %p353 = por %p351, %p352
      %p354 = scmp.ne.s32.totalorder %s346, %s349
      %p355 = scmp.eq.s32.totalorder %s33, 0
      %p356 = por %p354, %p355
      %p357 = scmp.ne.s32.totalorder %s346, %s349
      %p358 = scmp.eq.s32.totalorder %s38, 1
      %p359 = por %p357, %p358
      %p360 = scmp.ne.s32.totalorder %s349, %s350
      %p361 = scmp.eq.s32.totalorder %s38, 0
      %p362 = por %p360, %p361
      %p363 = scmp.ne.s32.totalorder %s349, %s350
      %p364 = scmp.eq.s32.totalorder %s39, 1
      %p365 = por %p363, %p364
      %p367 = scmp.ne.s32.totalorder %s350, %s366
      %p368 = scmp.eq.s32.totalorder %s39, 0
      %p369 = por %p367, %p368
      %s370 = ssub.s32 %s33, %s40
      %p371 = scmp.eq.s32.totalorder %s370, 0
      %s373 = sadd.s32 %s372, 1
      %s374 = scalar_select %p371, %s372, %s373
      %p377 = pneg %p371
      %p378 = scmp.eq.s32.totalorder %s33, 1
      %p379 = por %p377, %p378
      %p380 = scmp.ne.s32.totalorder %s372, %s375
      %p381 = scmp.eq.s32.totalorder %s33, 0
      %p382 = por %p380, %p381
      %p383 = scmp.ne.s32.totalorder %s372, %s375
      %p384 = scmp.eq.s32.totalorder %s38, 1
      %p385 = por %p383, %p384
      %p386 = scmp.ne.s32.totalorder %s375, %s376
      %p387 = scmp.eq.s32.totalorder %s38, 0
      %p388 = por %p386, %p387
      %p389 = scmp.ne.s32.totalorder %s375, %s376
      %p390 = scmp.eq.s32.totalorder %s39, 1
      %p391 = por %p389, %p390
      %p393 = scmp.ne.s32.totalorder %s376, %s392
      %p394 = scmp.eq.s32.totalorder %s39, 0
      %p395 = por %p393, %p394
      %s396 = ssub.s32 %s33, %s40
      %p397 = scmp.eq.s32.totalorder %s396, 0
      %s399 = sadd.s32 %s398, 1
      %s400 = scalar_select %p397, %s398, %s399
      %p403 = pneg %p397
      %p404 = scmp.eq.s32.totalorder %s33, 1
      %p405 = por %p403, %p404
      %p406 = scmp.ne.s32.totalorder %s398, %s401
      %p407 = scmp.eq.s32.totalorder %s33, 0
      %p408 = por %p406, %p407
      %p409 = scmp.ne.s32.totalorder %s398, %s401
      %p410 = scmp.eq.s32.totalorder %s38, 1
      %p411 = por %p409, %p410
      %p412 = scmp.ne.s32.totalorder %s401, %s402
      %p413 = scmp.eq.s32.totalorder %s38, 0
      %p414 = por %p412, %p413
      %p415 = scmp.ne.s32.totalorder %s401, %s402
      %p416 = scmp.eq.s32.totalorder %s39, 1
      %p417 = por %p415, %p416
      %p419 = scmp.ne.s32.totalorder %s402, %s418
      %p420 = scmp.eq.s32.totalorder %s39, 0
      %p421 = por %p419, %p420
      %s423 = sadd.s32 %s422, 1
      %p426 = scmp.eq.s32.totalorder %s33, 1
      %p427 = scmp.ne.s32.totalorder %s422, %s424
      %p428 = scmp.eq.s32.totalorder %s33, 0
      %p429 = por %p427, %p428
      %p430 = scmp.ne.s32.totalorder %s422, %s424
      %p431 = scmp.eq.s32.totalorder %s38, 1
      %p432 = por %p430, %p431
      %p433 = scmp.ne.s32.totalorder %s424, %s425
      %p434 = scmp.eq.s32.totalorder %s38, 0
      %p435 = por %p433, %p434
      %p436 = scmp.ne.s32.totalorder %s424, %s425
      %p437 = scmp.eq.s32.totalorder %s39, 1
      %p438 = por %p436, %p437
      %p440 = scmp.ne.s32.totalorder %s425, %s439
      %p441 = scmp.eq.s32.totalorder %s39, 0
      %p442 = por %p440, %p441
      %s444 = sadd.s32 %s443, 1
      %p447 = scmp.eq.s32.totalorder %s33, 1
      %p448 = scmp.ne.s32.totalorder %s443, %s445
      %p449 = scmp.eq.s32.totalorder %s33, 0
      %p450 = por %p448, %p449
      %p451 = scmp.ne.s32.totalorder %s443, %s445
      %p452 = scmp.eq.s32.totalorder %s38, 1
      %p453 = por %p451, %p452
      %p454 = scmp.ne.s32.totalorder %s445, %s446
      %p455 = scmp.eq.s32.totalorder %s38, 0
      %p456 = por %p454, %p455
      %p457 = scmp.ne.s32.totalorder %s445, %s446
      %p458 = scmp.eq.s32.totalorder %s39, 1
      %p459 = por %p457, %p458
      %p461 = scmp.ne.s32.totalorder %s446, %s460
      %p462 = scmp.eq.s32.totalorder %s39, 0
      %p463 = por %p461, %p462
      %p464 = scmp.le.s32.totalorder 1, %s33
      %p465 = scmp.lt.s32.totalorder %s33, 3
      %p466 = pnand %p464, %p465
      %p467 = pneg %p466
      // Predicated region
      $region9: #{tpu_custom_call.1} parent=5 // pred_check
        _
      $region10: #{tpu_custom_call.1} parent=5 // pred_check_branch
        %469 = sbr.rel (%p466) target = $region12
      $region11: #{tpu_custom_call.1} parent=5 // pred_region
        %s470 = ssub.s32 %s33, 1
        // Predicated region
        $region13: #{tpu_custom_call.1} parent=11 // pred_check
          %p471 = pneg %p54
        $region14: #{tpu_custom_call.1} parent=11 // pred_check_branch
          %473 = sbr.rel (%p471) target = $region16
        $region15: #{tpu_custom_call.1} parent=11 // pred_region
          _
        $region16: #{tpu_custom_call.1} parent=11 // pred_fallthru
          _
        // Predicated region
        $region17: #{tpu_custom_call.1} parent=11 // pred_check
          %p474 = pneg %p75
        $region18: #{tpu_custom_call.1} parent=11 // pred_check_branch
          %476 = sbr.rel (%p474) target = $region20
        $region19: #{tpu_custom_call.1} parent=11 // pred_region
          _
        $region20: #{tpu_custom_call.1} parent=11 // pred_fallthru
          _
        // Predicated region
        $region21: #{tpu_custom_call.1} parent=11 // pred_check
          %p477 = pneg %p96
        $region22: #{tpu_custom_call.1} parent=11 // pred_check_branch
          %479 = sbr.rel (%p477) target = $region24
        $region23: #{tpu_custom_call.1} parent=11 // pred_region
          %s481 = ssub.s32 128, 128
          %482 = vsyncadd [#allocation5], %s481
          %s484 = sshll.u32 [#allocation4], 4
          %s485 = int_to_ptr.vmem [resolvable:$true] %s484
          %487 = dma.hbm_to_vmem [thread:$0]  %s2, 128, %s485, [#allocation5]
        $region24: #{tpu_custom_call.1} parent=11 // pred_fallthru
          _
        // Predicated region
        $region25: #{tpu_custom_call.1} parent=11 // pred_check
          %p488 = pneg %p117
        $region26: #{tpu_custom_call.1} parent=11 // pred_check_branch
          %490 = sbr.rel (%p488) target = $region28
        $region27: #{tpu_custom_call.1} parent=11 // pred_region
          %s492 = ssub.s32 128, 128
          %493 = vsyncadd [#allocation8], %s492
          %s495 = sshll.u32 [#allocation7], 4
          %s496 = int_to_ptr.vmem [resolvable:$true] %s495
          %498 = dma.hbm_to_vmem [thread:$0]  %s3, 128, %s496, [#allocation8]
        $region28: #{tpu_custom_call.1} parent=11 // pred_fallthru
          _
        // Predicated region
        $region29: #{tpu_custom_call.1} parent=11 // pred_check
          %p499 = pneg %p138
        $region30: #{tpu_custom_call.1} parent=11 // pred_check_branch
          %501 = sbr.rel (%p499) target = $region32
        $region31: #{tpu_custom_call.1} parent=11 // pred_region
          %s503 = ssub.s32 128, 128
          %504 = vsyncadd [#allocation8], %s503
          %s506 = sshll.u32 [#allocation9], 4
          %s507 = int_to_ptr.vmem [resolvable:$true] %s506
          %509 = dma.hbm_to_vmem [thread:$0]  %s4, 128, %s507, [#allocation8]
        $region32: #{tpu_custom_call.1} parent=11 // pred_fallthru
          _
        // Predicated region
        $region33: #{tpu_custom_call.1} parent=11 // pred_check
          %p510 = pneg %p159
        $region34: #{tpu_custom_call.1} parent=11 // pred_check_branch
          %512 = sbr.rel (%p510) target = $region36
        $region35: #{tpu_custom_call.1} parent=11 // pred_region
          %s514 = ssub.s32 2048, 2048
          %515 = vsyncadd [#allocation11], %s514
          %s516 = sshll.u32 [#allocation10], 4
          %s517 = int_to_ptr.vmem [resolvable:$true] %s516
          %522 = dma.hbm_to_vmem [thread:$0]  %s5, 2048, %s517, [#allocation11], 128, 128, 8
        $region36: #{tpu_custom_call.1} parent=11 // pred_fallthru
          _
        // Predicated region
        $region37: #{tpu_custom_call.1} parent=11 // pred_check
          %p523 = pneg %p180
        $region38: #{tpu_custom_call.1} parent=11 // pred_check_branch
          %525 = sbr.rel (%p523) target = $region40
        $region39: #{tpu_custom_call.1} parent=11 // pred_region
          %s527 = ssub.s32 1024, 1024
          %528 = vsyncadd [#allocation11], %s527
          %s529 = sshll.u32 [#allocation12], 4
          %s530 = int_to_ptr.vmem [resolvable:$true] %s529
          %535 = dma.hbm_to_vmem [thread:$0]  %s6, 1024, %s530, [#allocation11], 128, 128, 8
        $region40: #{tpu_custom_call.1} parent=11 // pred_fallthru
          _
        // Predicated region
        $region41: #{tpu_custom_call.1} parent=11 // pred_check
          %p536 = pneg %p435
        $region42: #{tpu_custom_call.1} parent=11 // pred_check_branch
          %538 = sbr.rel (%p536) target = $region44
        $region43: #{tpu_custom_call.1} parent=11 // pred_region
          _
        $region44: #{tpu_custom_call.1} parent=11 // pred_fallthru
          _
      $region12: #{tpu_custom_call.1} parent=5 // pred_fallthru
        _
      %p539 = scmp.lt.s32.totalorder %s33, 2
      // Predicated region
      $region45: #{tpu_custom_call.1} parent=5 // pred_check
        %p540 = pneg %p539
      $region46: #{tpu_custom_call.1} parent=5 // pred_check_branch
        %542 = sbr.rel (%p540) target = $region48
      $region47: #{tpu_custom_call.1} parent=5 // pred_region
        // Predicated region
        $region49: #{tpu_custom_call.1} parent=47 // pred_check
          %p543 = pneg %p200
        $region50: #{tpu_custom_call.1} parent=47 // pred_check_branch
          %545 = sbr.rel (%p543) target = $region52
        $region51: #{tpu_custom_call.1} parent=47 // pred_region
          %p546 = scmp.lt.s32.totalorder %s33, 1
          %s547 = scalar_select %p546, %s33, 1
          %s548 = scalar_lea.vmem %s7, %s547
        $region52: #{tpu_custom_call.1} parent=47 // pred_fallthru
          _
        // Predicated region
        $region53: #{tpu_custom_call.1} parent=47 // pred_check
          %p549 = pneg %p226
        $region54: #{tpu_custom_call.1} parent=47 // pred_check_branch
          %551 = sbr.rel (%p549) target = $region56
        $region55: #{tpu_custom_call.1} parent=47 // pred_region
          %p552 = scmp.lt.s32.totalorder %s33, 1
          %s553 = scalar_select %p552, %s33, 1
          %s554 = smul.addr %s553, 16
          %s555 = smul.addr %s554, 8
          %s556 = scalar_lea.vmem %s8, %s555
        $region56: #{tpu_custom_call.1} parent=47 // pred_fallthru
          _
        // Predicated region
        $region57: #{tpu_custom_call.1} parent=47 // pred_check
          %p557 = pneg %p252
        $region58: #{tpu_custom_call.1} parent=47 // pred_check_branch
          %559 = sbr.rel (%p557) target = $region60
        $region59: #{tpu_custom_call.1} parent=47 // pred_region
          %p560 = scmp.lt.s32.totalorder %s33, 1
          %s561 = scalar_select %p560, %s33, 1
          %s562 = smul.addr %s561, 16
          %s563 = smul.addr %s562, 8
          %s564 = scalar_lea.vmem %s9, %s563
        $region60: #{tpu_custom_call.1} parent=47 // pred_fallthru
          _
        // Predicated region
        $region61: #{tpu_custom_call.1} parent=47 // pred_check
          %p565 = pneg %p278
        $region62: #{tpu_custom_call.1} parent=47 // pred_check_branch
          %567 = sbr.rel (%p565) target = $region64
        $region63: #{tpu_custom_call.1} parent=47 // pred_region
          %p568 = scmp.lt.s32.totalorder %s33, 1
          %s569 = scalar_select %p568, %s33, 1
          %s570 = smul.addr %s569, 16
          %s571 = smul.addr %s570, 8
          %s572 = scalar_lea.vmem %s10, %s571
        $region64: #{tpu_custom_call.1} parent=47 // pred_fallthru
          _
        // Predicated region
        $region65: #{tpu_custom_call.1} parent=47 // pred_check
          %p573 = pneg %p304
        $region66: #{tpu_custom_call.1} parent=47 // pred_check_branch
          %575 = sbr.rel (%p573) target = $region68
        $region67: #{tpu_custom_call.1} parent=47 // pred_region
          %s576 = sand.u32 %s33, 1
          %s577 = scalar_lea.sflag [#allocation14], %s576
          %s578 = sand.u32 %s294, 1
          %s579 = smul.addr %s578, 128
          %s580 = scalar_lea.vmem [#allocation13], %s579
          %s582 = ssub.s32 2048, 2048
          %583 = vsyncadd %s577, %s582
          %s584 = smul.addr %s33, 16
          %s585 = smul.addr %s584, 128
          %s586 = scalar_lea.hbm %s11, %s585
          %s587 = sshll.u32 %s580, 4
          %s588 = int_to_ptr.vmem [resolvable:$true] %s587
          %593 = dma.hbm_to_vmem [thread:$0]  %s586, 2048, %s588, %s577, 128, 128, 8
        $region68: #{tpu_custom_call.1} parent=47 // pred_fallthru
          _
        // Predicated region
        $region69: #{tpu_custom_call.1} parent=47 // pred_check
          %p594 = pneg %p330
        $region70: #{tpu_custom_call.1} parent=47 // pred_check_branch
          %596 = sbr.rel (%p594) target = $region72
        $region71: #{tpu_custom_call.1} parent=47 // pred_region
          %p597 = scmp.lt.s32.totalorder %s33, 1
          %s598 = scalar_select %p597, %s33, 1
          %s599 = scalar_lea.vmem %s12, %s598
        $region72: #{tpu_custom_call.1} parent=47 // pred_fallthru
          _
        // Predicated region
        $region73: #{tpu_custom_call.1} parent=47 // pred_check
          %p600 = pneg %p356
        $region74: #{tpu_custom_call.1} parent=47 // pred_check_branch
          %602 = sbr.rel (%p600) target = $region76
        $region75: #{tpu_custom_call.1} parent=47 // pred_region
          %p603 = scmp.lt.s32.totalorder %s33, 1
          %s604 = scalar_select %p603, %s33, 1
          %s605 = smul.addr %s604, 32
          %s606 = smul.addr %s605, 8
          %s607 = scalar_lea.vmem %s13, %s606
        $region76: #{tpu_custom_call.1} parent=47 // pred_fallthru
          _
        // Predicated region
        $region77: #{tpu_custom_call.1} parent=47 // pred_check
          %p608 = pneg %p382
        $region78: #{tpu_custom_call.1} parent=47 // pred_check_branch
          %610 = sbr.rel (%p608) target = $region80
        $region79: #{tpu_custom_call.1} parent=47 // pred_region
          %s611 = sand.u32 %s33, 1
          %s612 = scalar_lea.sflag [#allocation14], %s611
          %s613 = sand.u32 %s372, 1
          %s614 = smul.addr %s613, 256
          %s615 = scalar_lea.vmem [#allocation15], %s614
          %s617 = ssub.s32 4096, 4096
          %618 = vsyncadd %s612, %s617
          %s619 = smul.addr %s33, 32
          %s620 = smul.addr %s619, 128
          %s621 = scalar_lea.hbm %s14, %s620
          %s622 = sshll.u32 %s615, 4
          %s623 = int_to_ptr.vmem [resolvable:$true] %s622
          %628 = dma.hbm_to_vmem [thread:$0]  %s621, 4096, %s623, %s612, 256, 256, 16
        $region80: #{tpu_custom_call.1} parent=47 // pred_fallthru
          _
        // Predicated region
        $region81: #{tpu_custom_call.1} parent=47 // pred_check
          %p629 = pneg %p408
        $region82: #{tpu_custom_call.1} parent=47 // pred_check_branch
          %631 = sbr.rel (%p629) target = $region84
        $region83: #{tpu_custom_call.1} parent=47 // pred_region
          %s632 = sand.u32 %s398, 1
          %s633 = scalar_lea.sflag [#allocation17], %s632
          %s634 = sand.u32 %s398, 1
          %s635 = smul.addr %s634, 256
          %s636 = scalar_lea.vmem [#allocation16], %s635
          %s638 = ssub.s32 4096, 4096
          %639 = vsyncadd %s633, %s638
          %s640 = smul.addr %s33, 32
          %s641 = smul.addr %s640, 128
          %s642 = scalar_lea.hbm %s15, %s641
          %s643 = sshll.u32 %s636, 4
          %s644 = int_to_ptr.vmem [resolvable:$true] %s643
          %649 = dma.hbm_to_vmem [thread:$0]  %s642, 4096, %s644, %s633, 128, 128, 8
        $region84: #{tpu_custom_call.1} parent=47 // pred_fallthru
          _
      $region48: #{tpu_custom_call.1} parent=5 // pred_fallthru
        _
      %p650 = scmp.le.s32.totalorder 1, %s33
      %p651 = scmp.lt.s32.totalorder %s33, 3
      %p652 = pnand %p650, %p651
      %p653 = pneg %p652
      // Predicated region
      $region85: #{tpu_custom_call.1} parent=5 // pred_check
        _
      $region86: #{tpu_custom_call.1} parent=5 // pred_check_branch
        %655 = sbr.rel (%p652) target = $region88
      $region87: #{tpu_custom_call.1} parent=5 // pred_region
        %s656 = ssub.s32 %s33, 1
        // Predicated region
        $region89: #{tpu_custom_call.1} parent=87 // pred_check
          %p657 = pneg %p96
        $region90: #{tpu_custom_call.1} parent=87 // pred_check_branch
          %659 = sbr.rel (%p657) target = $region92
        $region91: #{tpu_custom_call.1} parent=87 // pred_region
          %660 = dma.done [#allocation5], 128
        $region92: #{tpu_custom_call.1} parent=87 // pred_fallthru
          _
        // Predicated region
        $region93: #{tpu_custom_call.1} parent=87 // pred_check
          %p661 = pneg %p117
        $region94: #{tpu_custom_call.1} parent=87 // pred_check_branch
          %663 = sbr.rel (%p661) target = $region96
        $region95: #{tpu_custom_call.1} parent=87 // pred_region
          %664 = dma.done [#allocation8], 128
        $region96: #{tpu_custom_call.1} parent=87 // pred_fallthru
          _
        // Predicated region
        $region97: #{tpu_custom_call.1} parent=87 // pred_check
          %p665 = pneg %p138
        $region98: #{tpu_custom_call.1} parent=87 // pred_check_branch
          %667 = sbr.rel (%p665) target = $region100
        $region99: #{tpu_custom_call.1} parent=87 // pred_region
          %668 = dma.done [#allocation8], 128
        $region100: #{tpu_custom_call.1} parent=87 // pred_fallthru
          _
        // Predicated region
        $region101: #{tpu_custom_call.1} parent=87 // pred_check
          %p669 = pneg %p159
        $region102: #{tpu_custom_call.1} parent=87 // pred_check_branch
          %671 = sbr.rel (%p669) target = $region104
        $region103: #{tpu_custom_call.1} parent=87 // pred_region
          %672 = dma.done [#allocation11], 2048
        $region104: #{tpu_custom_call.1} parent=87 // pred_fallthru
          _
        // Predicated region
        $region105: #{tpu_custom_call.1} parent=87 // pred_check
          %p673 = pneg %p180
        $region106: #{tpu_custom_call.1} parent=87 // pred_check_branch
          %675 = sbr.rel (%p673) target = $region108
        $region107: #{tpu_custom_call.1} parent=87 // pred_region
          %676 = dma.done [#allocation11], 1024
        $region108: #{tpu_custom_call.1} parent=87 // pred_fallthru
          _
        %s677 = sand.u32 %s38, 1
        %s678 = scalar_lea.sflag [#allocation14], %s677
        %s679 = sand.u32 %s297, 1
        %s680 = smul.addr %s679, 128
        %s681 = scalar_lea.vmem [#allocation13], %s680
        // Predicated region
        $region109: #{tpu_custom_call.1} parent=87 // pred_check
          %p682 = pneg %p310
        $region110: #{tpu_custom_call.1} parent=87 // pred_check_branch
          %684 = sbr.rel (%p682) target = $region112
        $region111: #{tpu_custom_call.1} parent=87 // pred_region
          %685 = dma.done %s678, 2048
        $region112: #{tpu_custom_call.1} parent=87 // pred_fallthru
          _
        %s686 = sand.u32 %s38, 1
        %s687 = scalar_lea.sflag [#allocation14], %s686
        %s688 = sand.u32 %s375, 1
        %s689 = smul.addr %s688, 256
        %s690 = scalar_lea.vmem [#allocation15], %s689
        // Predicated region
        $region113: #{tpu_custom_call.1} parent=87 // pred_check
          %p691 = pneg %p388
        $region114: #{tpu_custom_call.1} parent=87 // pred_check_branch
          %693 = sbr.rel (%p691) target = $region116
        $region115: #{tpu_custom_call.1} parent=87 // pred_region
          %694 = dma.done %s687, 4096
        $region116: #{tpu_custom_call.1} parent=87 // pred_fallthru
          _
        %s695 = sand.u32 %s401, 1
        %s696 = scalar_lea.sflag [#allocation17], %s695
        %s697 = sand.u32 %s401, 1
        %s698 = smul.addr %s697, 256
        %s699 = scalar_lea.vmem [#allocation16], %s698
        // Predicated region
        $region117: #{tpu_custom_call.1} parent=87 // pred_check
          %p700 = pneg %p414
        $region118: #{tpu_custom_call.1} parent=87 // pred_check_branch
          %702 = sbr.rel (%p700) target = $region120
        $region119: #{tpu_custom_call.1} parent=87 // pred_region
          %703 = dma.done %s696, 4096
        $region120: #{tpu_custom_call.1} parent=87 // pred_fallthru
          _
        %p704 = pneg %p54
        %p705 = pneg %p51
        %p706 = pneg %p75
        %p707 = pneg %p72
        %p708 = pneg %p96
        %p709 = pneg %p93
        %p710 = pneg %p117
        %p711 = pneg %p114
        %p712 = pneg %p138
        %p713 = pneg %p135
        %p714 = pneg %p159
        %p715 = pneg %p156
        %p716 = pneg %p180
        %p717 = pneg %p177
        %p718 = scmp.lt.s32.totalorder %s38, 1
        %s719 = scalar_select %p718, %s38, 1
        %s720 = scalar_lea.vmem %s7, %s719
        %p721 = pneg %p206
        %p722 = pneg %p203
        %p723 = scmp.lt.s32.totalorder %s38, 1
        %s724 = scalar_select %p723, %s38, 1
        %s725 = smul.addr %s724, 16
        %s726 = smul.addr %s725, 8
        %s727 = scalar_lea.vmem %s8, %s726
        %p728 = pneg %p232
        %p729 = pneg %p229
        %p730 = scmp.lt.s32.totalorder %s38, 1
        %s731 = scalar_select %p730, %s38, 1
        %s732 = smul.addr %s731, 16
        %s733 = smul.addr %s732, 8
        %s734 = scalar_lea.vmem %s9, %s733
        %p735 = pneg %p258
        %p736 = pneg %p255
        %p737 = scmp.lt.s32.totalorder %s38, 1
        %s738 = scalar_select %p737, %s38, 1
        %s739 = smul.addr %s738, 16
        %s740 = smul.addr %s739, 8
        %s741 = scalar_lea.vmem %s10, %s740
        %p742 = pneg %p284
        %p743 = pneg %p281
        %s744 = sand.u32 %s38, 1
        %s745 = scalar_lea.sflag [#allocation14], %s744
        %s746 = sand.u32 %s297, 1
        %s747 = smul.addr %s746, 128
        %s748 = scalar_lea.vmem [#allocation13], %s747
        %p749 = pneg %p310
        %p750 = pneg %p307
        %p751 = scmp.lt.s32.totalorder %s38, 1
        %s752 = scalar_select %p751, %s38, 1
        %s753 = scalar_lea.vmem %s12, %s752
        %p754 = pneg %p336
        %p755 = pneg %p333
        %p756 = scmp.lt.s32.totalorder %s38, 1
        %s757 = scalar_select %p756, %s38, 1
        %s758 = smul.addr %s757, 32
        %s759 = smul.addr %s758, 8
        %s760 = scalar_lea.vmem %s13, %s759
        %p761 = pneg %p362
        %p762 = pneg %p359
        %s763 = sand.u32 %s38, 1
        %s764 = scalar_lea.sflag [#allocation14], %s763
        %s765 = sand.u32 %s375, 1
        %s766 = smul.addr %s765, 256
        %s767 = scalar_lea.vmem [#allocation15], %s766
        %p768 = pneg %p388
        %p769 = pneg %p385
        %s770 = sand.u32 %s401, 1
        %s771 = scalar_lea.sflag [#allocation17], %s770
        %s772 = sand.u32 %s401, 1
        %s773 = smul.addr %s772, 256
        %s774 = scalar_lea.vmem [#allocation16], %s773
        %p775 = pneg %p414
        %p776 = pneg %p411
        %p777 = pneg %p435
        %p778 = pneg %p432
        %p779 = pneg %p456
        %p780 = pneg %p453
        %p781 = scmp.lt.s32.totalorder %s38, 1
        %s782 = scalar_select %p781, %s38, 1
        %s783 = scalar_lea.vmem %s7, %s782
        %p784 = scmp.lt.s32.totalorder %s38, 1
        %s785 = scalar_select %p784, %s38, 1
        %s786 = smul.addr %s785, 16
        %s787 = smul.addr %s786, 8
        %s788 = scalar_lea.vmem %s8, %s787
        %p789 = scmp.lt.s32.totalorder %s38, 1
        %s790 = scalar_select %p789, %s38, 1
        %s791 = smul.addr %s790, 16
        %s792 = smul.addr %s791, 8
        %s793 = scalar_lea.vmem %s9, %s792
        %p794 = scmp.lt.s32.totalorder %s38, 1
        %s795 = scalar_select %p794, %s38, 1
        %s796 = smul.addr %s795, 16
        %s797 = smul.addr %s796, 8
        %s798 = scalar_lea.vmem %s10, %s797
        %p799 = scmp.lt.s32.totalorder %s38, 1
        %s800 = scalar_select %p799, %s38, 1
        %s801 = scalar_lea.vmem %s12, %s800
        %p802 = scmp.lt.s32.totalorder %s38, 1
        %s803 = scalar_select %p802, %s38, 1
        %s804 = smul.addr %s803, 32
        %s805 = smul.addr %s804, 8
        %s806 = scalar_lea.vmem %s13, %s805
        %p807 = scmp.eq.s32.totalorder %s38, 0
        // Predicated region
        $region121: #{tpu_custom_call.1} parent=87 // pred_check
          %p808 = pneg %p807
        $region122: #{tpu_custom_call.1} parent=87 // pred_check_branch
          %810 = sbr.rel (%p808) target = $region124
        $region123: #{tpu_custom_call.1} parent=87 // pred_region
          %v811 = vld [vmem:[%s0] sm:$0xff]
          %812 = vst [vmem:[#allocation2] sm:$0xff] %v811
          %813 = vst [vmem:[#allocation3] sm:$0xff] 0.0
        $region124: #{tpu_custom_call.1} parent=87 // pred_fallthru
          _
        %v814 = vld [vmem:[#allocation2] sm:$0xff]
        %v815 = vld [vmem:[#allocation3] sm:$0xff]
        %v816 = vadd.f32 %v814, %v815
        %817 = vst [vmem:[#allocation3] sm:$0xff] %v816
        %v818 = vld [vmem:[%s783] sm:$0x1]
        %v819 = vmul.f32 %v816, %v816
        %820 = vadd.xlane.f32.xlu0 %v819
        %v821 = vpop.xlane.xlu0 %820
        %v822 = vrcp.pop 128.0
        %v823 = vmul.f32 %v821, %v822
        %v824 = vadd.f32 %v823, 1e-05
        %v825 = vrsqrt.pop %v824
        %v826 = vmul.f32 %v816, %v825
        %v828 = vlaneseq
        %v829 = vshrl.u32 %v828, 7
        %v830 = vsub.s32 0, %v829
        %v831 = vrot.slane %v818, %v830
        %v833 = vmul.f32 %v826, %v831
        %v834 = vld [vmem:[%s788] sm:$0xff]
        %v835 = vld [vmem:[%s788 + $0x8] sm:$0xff]
        %v836 = vld [vmem:[%s788 + $0x10] sm:$0xff]
        %v837 = vld [vmem:[%s788 + $0x18] sm:$0xff]
        %v838 = vld [vmem:[%s788 + $0x20] sm:$0xff]
        %v839 = vld [vmem:[%s788 + $0x28] sm:$0xff]
        %v840 = vld [vmem:[%s788 + $0x30] sm:$0xff]
        %v841 = vld [vmem:[%s788 + $0x38] sm:$0xff]
        %v842 = vld [vmem:[%s788 + $0x40] sm:$0xff]
        %v843 = vld [vmem:[%s788 + $0x48] sm:$0xff]
        %v844 = vld [vmem:[%s788 + $0x50] sm:$0xff]
        %v845 = vld [vmem:[%s788 + $0x58] sm:$0xff]
        %v846 = vld [vmem:[%s788 + $0x60] sm:$0xff]
        %v847 = vld [vmem:[%s788 + $0x68] sm:$0xff]
        %v848 = vld [vmem:[%s788 + $0x70] sm:$0xff]
        %v849 = vld [vmem:[%s788 + $0x78] sm:$0xff]
        %850 = vmatprep.subr.mxu0 0.0
        %851 = vmatpush1.msra.mxu0 %v849
        %852 = vmatprep.subr.mxu0 0.0
        %853 = vmatpush1.msra.mxu0 %v848
        %854 = vmatprep.subr.mxu0 0.0
        %855 = vmatpush1.msra.mxu0 %v847
        %856 = vmatprep.subr.mxu0 0.0
        %857 = vmatpush1.msra.mxu0 %v846
        %858 = vmatprep.subr.mxu0 0.0
        %859 = vmatpush1.msra.mxu0 %v845
        %860 = vmatprep.subr.mxu0 0.0
        %861 = vmatpush1.msra.mxu0 %v844
        %862 = vmatprep.subr.mxu0 0.0
        %863 = vmatpush1.msra.mxu0 %v843
        %864 = vmatprep.subr.mxu0 0.0
        %865 = vmatpush1.msra.mxu0 %v842
        %866 = vmatprep.subr.mxu0 0.0
        %867 = vmatpush1.msra.mxu0 %v841
        %868 = vmatprep.subr.mxu0 0.0
        %869 = vmatpush1.msra.mxu0 %v840
        %870 = vmatprep.subr.mxu0 0.0
        %871 = vmatpush1.msra.mxu0 %v839
        %872 = vmatprep.subr.mxu0 0.0
        %873 = vmatpush1.msra.mxu0 %v838
        %874 = vmatprep.subr.mxu0 0.0
        %875 = vmatpush1.msra.mxu0 %v837
        %876 = vmatprep.subr.mxu0 0.0
        %877 = vmatpush1.msra.mxu0 %v836
        %878 = vmatprep.subr.mxu0 0.0
        %879 = vmatpush1.msra.mxu0 %v835
        %880 = vmatprep.subr.mxu0 0.0
        %881 = vmatpush1.msra.mxu0 %v834
        %882 = vmatprep.subr.mxu0 0.0
        %883 = vmatpush2.msra.mxu0 0.0
        %884 = vmatprep.subr.mxu0 0.0
        %885 = vmatpush2.msra.mxu0 0.0
        %886 = vmatprep.subr.mxu0 0.0
        %887 = vmatpush2.msra.mxu0 0.0
        %888 = vmatprep.subr.mxu0 0.0
        %889 = vmatpush2.msra.mxu0 0.0
        %890 = vmatprep.subr.mxu0 0.0
        %891 = vmatpush2.msra.mxu0 0.0
        %892 = vmatprep.subr.mxu0 0.0
        %893 = vmatpush2.msra.mxu0 0.0
        %894 = vmatprep.subr.mxu0 0.0
        %895 = vmatpush2.msra.mxu0 0.0
        %896 = vmatprep.subr.mxu0 0.0
        %897 = vmatpush2.msra.mxu0 0.0
        %898 = vmatprep.subr.mxu0 0.0
        %899 = vmatpush2.msra.mxu0 0.0
        %900 = vmatprep.subr.mxu0 0.0
        %901 = vmatpush2.msra.mxu0 0.0
        %902 = vmatprep.subr.mxu0 0.0
        %903 = vmatpush2.msra.mxu0 0.0
        %904 = vmatprep.subr.mxu0 0.0
        %905 = vmatpush2.msra.mxu0 0.0
        %906 = vmatprep.subr.mxu0 0.0
        %907 = vmatpush2.msra.mxu0 0.0
        %908 = vmatprep.subr.mxu0 0.0
        %909 = vmatpush2.msra.mxu0 0.0
        %910 = vmatprep.subr.mxu0 0.0
        %911 = vmatpush2.msra.mxu0 0.0
        %912 = vmatprep.subr.mxu0 0.0
        %913 = vmatpush2.msra.mxu0 0.0
        %914 = vmatprep.mubr.f32.mxu0 0.0
        %915 = vmatmul.mubr.f32.gmra.mxu0 %v833
        %v916 = vpop.f32.mrf.mxu0
        %v917 = vadd.f32 0.0, %v916
        %v918 = vpop.f32.mrf.mxu0
        %919 = vdwg.mxu0
        %v920 = vld [vmem:[%s793] sm:$0xff]
        %v921 = vld [vmem:[%s793 + $0x8] sm:$0xff]
        %v922 = vld [vmem:[%s793 + $0x10] sm:$0xff]
        %v923 = vld [vmem:[%s793 + $0x18] sm:$0xff]
        %v924 = vld [vmem:[%s793 + $0x20] sm:$0xff]
        %v925 = vld [vmem:[%s793 + $0x28] sm:$0xff]
        %v926 = vld [vmem:[%s793 + $0x30] sm:$0xff]
        %v927 = vld [vmem:[%s793 + $0x38] sm:$0xff]
        %v928 = vld [vmem:[%s793 + $0x40] sm:$0xff]
        %v929 = vld [vmem:[%s793 + $0x48] sm:$0xff]
        %v930 = vld [vmem:[%s793 + $0x50] sm:$0xff]
        %v931 = vld [vmem:[%s793 + $0x58] sm:$0xff]
        %v932 = vld [vmem:[%s793 + $0x60] sm:$0xff]
        %v933 = vld [vmem:[%s793 + $0x68] sm:$0xff]
        %v934 = vld [vmem:[%s793 + $0x70] sm:$0xff]
        %v935 = vld [vmem:[%s793 + $0x78] sm:$0xff]
        %936 = vmatprep.subr.mxu0 0.0
        %937 = vmatpush1.msra.mxu0 %v935
        %938 = vmatprep.subr.mxu0 0.0
        %939 = vmatpush1.msra.mxu0 %v934
        %940 = vmatprep.subr.mxu0 0.0
        %941 = vmatpush1.msra.mxu0 %v933
        %942 = vmatprep.subr.mxu0 0.0
        %943 = vmatpush1.msra.mxu0 %v932
        %944 = vmatprep.subr.mxu0 0.0
        %945 = vmatpush1.msra.mxu0 %v931
        %946 = vmatprep.subr.mxu0 0.0
        %947 = vmatpush1.msra.mxu0 %v930
        %948 = vmatprep.subr.mxu0 0.0
        %949 = vmatpush1.msra.mxu0 %v929
        %950 = vmatprep.subr.mxu0 0.0
        %951 = vmatpush1.msra.mxu0 %v928
        %952 = vmatprep.subr.mxu0 0.0
        %953 = vmatpush1.msra.mxu0 %v927
        %954 = vmatprep.subr.mxu0 0.0
        %955 = vmatpush1.msra.mxu0 %v926
        %956 = vmatprep.subr.mxu0 0.0
        %957 = vmatpush1.msra.mxu0 %v925
        %958 = vmatprep.subr.mxu0 0.0
        %959 = vmatpush1.msra.mxu0 %v924
        %960 = vmatprep.subr.mxu0 0.0
        %961 = vmatpush1.msra.mxu0 %v923
        %962 = vmatprep.subr.mxu0 0.0
        %963 = vmatpush1.msra.mxu0 %v922
        %964 = vmatprep.subr.mxu0 0.0
        %965 = vmatpush1.msra.mxu0 %v921
        %966 = vmatprep.subr.mxu0 0.0
        %967 = vmatpush1.msra.mxu0 %v920
        %968 = vmatprep.subr.mxu0 0.0
        %969 = vmatpush2.msra.mxu0 0.0
        %970 = vmatprep.subr.mxu0 0.0
        %971 = vmatpush2.msra.mxu0 0.0
        %972 = vmatprep.subr.mxu0 0.0
        %973 = vmatpush2.msra.mxu0 0.0
        %974 = vmatprep.subr.mxu0 0.0
        %975 = vmatpush2.msra.mxu0 0.0
        %976 = vmatprep.subr.mxu0 0.0
        %977 = vmatpush2.msra.mxu0 0.0
        %978 = vmatprep.subr.mxu0 0.0
        %979 = vmatpush2.msra.mxu0 0.0
        %980 = vmatprep.subr.mxu0 0.0
        %981 = vmatpush2.msra.mxu0 0.0
        %982 = vmatprep.subr.mxu0 0.0
        %983 = vmatpush2.msra.mxu0 0.0
        %984 = vmatprep.subr.mxu0 0.0
        %985 = vmatpush2.msra.mxu0 0.0
        %986 = vmatprep.subr.mxu0 0.0
        %987 = vmatpush2.msra.mxu0 0.0
        %988 = vmatprep.subr.mxu0 0.0
        %989 = vmatpush2.msra.mxu0 0.0
        %990 = vmatprep.subr.mxu0 0.0
        %991 = vmatpush2.msra.mxu0 0.0
        %992 = vmatprep.subr.mxu0 0.0
        %993 = vmatpush2.msra.mxu0 0.0
        %994 = vmatprep.subr.mxu0 0.0
        %995 = vmatpush2.msra.mxu0 0.0
        %996 = vmatprep.subr.mxu0 0.0
        %997 = vmatpush2.msra.mxu0 0.0
        %998 = vmatprep.subr.mxu0 0.0
        %999 = vmatpush2.msra.mxu0 0.0
        %1000 = vmatprep.mubr.f32.mxu0 0.0
        %1001 = vmatmul.mubr.f32.gmra.mxu0 %v833
        %v1002 = vpop.f32.mrf.mxu0
        %v1003 = vadd.f32 0.0, %v1002
        %v1004 = vpop.f32.mrf.mxu0
        %1005 = vdwg.mxu0
        %v1006 = vld [vmem:[%s798] sm:$0xff]
        %v1007 = vld [vmem:[%s798 + $0x8] sm:$0xff]
        %v1008 = vld [vmem:[%s798 + $0x10] sm:$0xff]
        %v1009 = vld [vmem:[%s798 + $0x18] sm:$0xff]
        %v1010 = vld [vmem:[%s798 + $0x20] sm:$0xff]
        %v1011 = vld [vmem:[%s798 + $0x28] sm:$0xff]
        %v1012 = vld [vmem:[%s798 + $0x30] sm:$0xff]
        %v1013 = vld [vmem:[%s798 + $0x38] sm:$0xff]
        %v1014 = vld [vmem:[%s798 + $0x40] sm:$0xff]
        %v1015 = vld [vmem:[%s798 + $0x48] sm:$0xff]
        %v1016 = vld [vmem:[%s798 + $0x50] sm:$0xff]
        %v1017 = vld [vmem:[%s798 + $0x58] sm:$0xff]
        %v1018 = vld [vmem:[%s798 + $0x60] sm:$0xff]
        %v1019 = vld [vmem:[%s798 + $0x68] sm:$0xff]
        %v1020 = vld [vmem:[%s798 + $0x70] sm:$0xff]
        %v1021 = vld [vmem:[%s798 + $0x78] sm:$0xff]
        %1022 = vmatprep.subr.mxu0 0.0
        %1023 = vmatpush1.msra.mxu0 %v1021
        %1024 = vmatprep.subr.mxu0 0.0
        %1025 = vmatpush1.msra.mxu0 %v1020
        %1026 = vmatprep.subr.mxu0 0.0
        %1027 = vmatpush1.msra.mxu0 %v1019
        %1028 = vmatprep.subr.mxu0 0.0
        %1029 = vmatpush1.msra.mxu0 %v1018
        %1030 = vmatprep.subr.mxu0 0.0
        %1031 = vmatpush1.msra.mxu0 %v1017
        %1032 = vmatprep.subr.mxu0 0.0
        %1033 = vmatpush1.msra.mxu0 %v1016
        %1034 = vmatprep.subr.mxu0 0.0
        %1035 = vmatpush1.msra.mxu0 %v1015
        %1036 = vmatprep.subr.mxu0 0.0
        %1037 = vmatpush1.msra.mxu0 %v1014
        %1038 = vmatprep.subr.mxu0 0.0
        %1039 = vmatpush1.msra.mxu0 %v1013
        %1040 = vmatprep.subr.mxu0 0.0
        %1041 = vmatpush1.msra.mxu0 %v1012
        %1042 = vmatprep.subr.mxu0 0.0
        %1043 = vmatpush1.msra.mxu0 %v1011
        %1044 = vmatprep.subr.mxu0 0.0
        %1045 = vmatpush1.msra.mxu0 %v1010
        %1046 = vmatprep.subr.mxu0 0.0
        %1047 = vmatpush1.msra.mxu0 %v1009
        %1048 = vmatprep.subr.mxu0 0.0
        %1049 = vmatpush1.msra.mxu0 %v1008
        %1050 = vmatprep.subr.mxu0 0.0
        %1051 = vmatpush1.msra.mxu0 %v1007
        %1052 = vmatprep.subr.mxu0 0.0
        %1053 = vmatpush1.msra.mxu0 %v1006
        %1054 = vmatprep.subr.mxu0 0.0
        %1055 = vmatpush2.msra.mxu0 0.0
        %1056 = vmatprep.subr.mxu0 0.0
        %1057 = vmatpush2.msra.mxu0 0.0
        %1058 = vmatprep.subr.mxu0 0.0
        %1059 = vmatpush2.msra.mxu0 0.0
        %1060 = vmatprep.subr.mxu0 0.0
        %1061 = vmatpush2.msra.mxu0 0.0
        %1062 = vmatprep.subr.mxu0 0.0
        %1063 = vmatpush2.msra.mxu0 0.0
        %1064 = vmatprep.subr.mxu0 0.0
        %1065 = vmatpush2.msra.mxu0 0.0
        %1066 = vmatprep.subr.mxu0 0.0
        %1067 = vmatpush2.msra.mxu0 0.0
        %1068 = vmatprep.subr.mxu0 0.0
        %1069 = vmatpush2.msra.mxu0 0.0
        %1070 = vmatprep.subr.mxu0 0.0
        %1071 = vmatpush2.msra.mxu0 0.0
        %1072 = vmatprep.subr.mxu0 0.0
        %1073 = vmatpush2.msra.mxu0 0.0
        %1074 = vmatprep.subr.mxu0 0.0
        %1075 = vmatpush2.msra.mxu0 0.0
        %1076 = vmatprep.subr.mxu0 0.0
        %1077 = vmatpush2.msra.mxu0 0.0
        %1078 = vmatprep.subr.mxu0 0.0
        %1079 = vmatpush2.msra.mxu0 0.0
        %1080 = vmatprep.subr.mxu0 0.0
        %1081 = vmatpush2.msra.mxu0 0.0
        %1082 = vmatprep.subr.mxu0 0.0
        %1083 = vmatpush2.msra.mxu0 0.0
        %1084 = vmatprep.subr.mxu0 0.0
        %1085 = vmatpush2.msra.mxu0 0.0
        %1086 = vmatprep.mubr.f32.mxu0 0.0
        %1087 = vmatmul.mubr.f32.gmra.mxu0 %v833
        %v1088 = vpop.f32.mrf.mxu0
        %v1089 = vadd.f32 0.0, %v1088
        %v1090 = vpop.f32.mrf.mxu0
        %1091 = vdwg.mxu0
        %v1092 = vld [vmem:[%s1] sm:$0xff]
        %v1093 = vmul.f32 %v917, %v1092
        %v1094 = vld [vmem:[#allocation10] sm:$0xff]
        %v1095 = vld [vmem:[#allocation10 + $0x8] sm:$0xff]
        %v1096 = vld [vmem:[#allocation10 + $0x10] sm:$0xff]
        %v1097 = vld [vmem:[#allocation10 + $0x18] sm:$0xff]
        %v1098 = vld [vmem:[#allocation10 + $0x20] sm:$0xff]
        %v1099 = vld [vmem:[#allocation10 + $0x28] sm:$0xff]
        %v1100 = vld [vmem:[#allocation10 + $0x30] sm:$0xff]
        %v1101 = vld [vmem:[#allocation10 + $0x38] sm:$0xff]
        %v1102 = vld [vmem:[#allocation10 + $0x40] sm:$0xff]
        %v1103 = vld [vmem:[#allocation10 + $0x48] sm:$0xff]
        %v1104 = vld [vmem:[#allocation10 + $0x50] sm:$0xff]
        %v1105 = vld [vmem:[#allocation10 + $0x58] sm:$0xff]
        %v1106 = vld [vmem:[#allocation10 + $0x60] sm:$0xff]
        %v1107 = vld [vmem:[#allocation10 + $0x68] sm:$0xff]
        %v1108 = vld [vmem:[#allocation10 + $0x70] sm:$0xff]
        %v1109 = vld [vmem:[#allocation10 + $0x78] sm:$0xff]
        %1110 = vmatprep.subr.mxu0 0.0
        %1111 = vmatpush1.msra.mxu0 %v1109
        %1112 = vmatprep.subr.mxu0 0.0
        %1113 = vmatpush1.msra.mxu0 %v1108
        %1114 = vmatprep.subr.mxu0 0.0
        %1115 = vmatpush1.msra.mxu0 %v1107
        %1116 = vmatprep.subr.mxu0 0.0
        %1117 = vmatpush1.msra.mxu0 %v1106
        %1118 = vmatprep.subr.mxu0 0.0
        %1119 = vmatpush1.msra.mxu0 %v1105
        %1120 = vmatprep.subr.mxu0 0.0
        %1121 = vmatpush1.msra.mxu0 %v1104
        %1122 = vmatprep.subr.mxu0 0.0
        %1123 = vmatpush1.msra.mxu0 %v1103
        %1124 = vmatprep.subr.mxu0 0.0
        %1125 = vmatpush1.msra.mxu0 %v1102
        %1126 = vmatprep.subr.mxu0 0.0
        %1127 = vmatpush1.msra.mxu0 %v1101
        %1128 = vmatprep.subr.mxu0 0.0
        %1129 = vmatpush1.msra.mxu0 %v1100
        %1130 = vmatprep.subr.mxu0 0.0
        %1131 = vmatpush1.msra.mxu0 %v1099
        %1132 = vmatprep.subr.mxu0 0.0
        %1133 = vmatpush1.msra.mxu0 %v1098
        %1134 = vmatprep.subr.mxu0 0.0
        %1135 = vmatpush1.msra.mxu0 %v1097
        %1136 = vmatprep.subr.mxu0 0.0
        %1137 = vmatpush1.msra.mxu0 %v1096
        %1138 = vmatprep.subr.mxu0 0.0
        %1139 = vmatpush1.msra.mxu0 %v1095
        %1140 = vmatprep.subr.mxu0 0.0
        %1141 = vmatpush1.msra.mxu0 %v1094
        %1142 = vmatprep.subr.mxu0 0.0
        %1143 = vmatpush2.msra.mxu0 0.0
        %1144 = vmatprep.subr.mxu0 0.0
        %1145 = vmatpush2.msra.mxu0 0.0
        %1146 = vmatprep.subr.mxu0 0.0
        %1147 = vmatpush2.msra.mxu0 0.0
        %1148 = vmatprep.subr.mxu0 0.0
        %1149 = vmatpush2.msra.mxu0 0.0
        %1150 = vmatprep.subr.mxu0 0.0
        %1151 = vmatpush2.msra.mxu0 0.0
        %1152 = vmatprep.subr.mxu0 0.0
        %1153 = vmatpush2.msra.mxu0 0.0
        %1154 = vmatprep.subr.mxu0 0.0
        %1155 = vmatpush2.msra.mxu0 0.0
        %1156 = vmatprep.subr.mxu0 0.0
        %1157 = vmatpush2.msra.mxu0 0.0
        %1158 = vmatprep.subr.mxu0 0.0
        %1159 = vmatpush2.msra.mxu0 0.0
        %1160 = vmatprep.subr.mxu0 0.0
        %1161 = vmatpush2.msra.mxu0 0.0
        %1162 = vmatprep.subr.mxu0 0.0
        %1163 = vmatpush2.msra.mxu0 0.0
        %1164 = vmatprep.subr.mxu0 0.0
        %1165 = vmatpush2.msra.mxu0 0.0
        %1166 = vmatprep.subr.mxu0 0.0
        %1167 = vmatpush2.msra.mxu0 0.0
        %1168 = vmatprep.subr.mxu0 0.0
        %1169 = vmatpush2.msra.mxu0 0.0
        %1170 = vmatprep.subr.mxu0 0.0
        %1171 = vmatpush2.msra.mxu0 0.0
        %1172 = vmatprep.subr.mxu0 0.0
        %1173 = vmatpush2.msra.mxu0 0.0
        %1174 = vmatprep.mubr.f32.mxu0 0.0
        %1175 = vmatmul.mubr.f32.gmra.mxu0 %v917
        %v1176 = vpop.f32.mrf.mxu0
        %v1177 = vadd.f32 0.0, %v1176
        %v1178 = vpop.f32.mrf.mxu0
        %1179 = vdwg.mxu0
        %v1180 = vld [vmem:[#allocation4] sm:$0xff]
        %v1181 = vmul.f32 %v1177, %v1180
        %v1182 = vadd.f32 %v1093, %v1181
        %v1183 = vld [vmem:[#allocation7] sm:$0xff]
        %v1184 = vmul.f32 %v1003, %v1183
        %v1185 = vld [vmem:[#allocation12] sm:$0xff]
        %v1186 = vld [vmem:[#allocation12 + $0x8] sm:$0xff]
        %v1187 = vld [vmem:[#allocation12 + $0x10] sm:$0xff]
        %v1188 = vld [vmem:[#allocation12 + $0x18] sm:$0xff]
        %v1189 = vld [vmem:[#allocation12 + $0x20] sm:$0xff]
        %v1190 = vld [vmem:[#allocation12 + $0x28] sm:$0xff]
        %v1191 = vld [vmem:[#allocation12 + $0x30] sm:$0xff]
        %v1192 = vld [vmem:[#allocation12 + $0x38] sm:$0xff]
        %vm1193 = vcmask 523264
        %v1195 = vsel %vm1193, %v1003, 0
        %1197 = vmatprep.subr.mxu0 0.0
        %1198 = vmatpush1.msra.mxu0 0.0
        %1199 = vmatprep.subr.mxu0 0.0
        %1200 = vmatpush1.msra.mxu0 0.0
        %1201 = vmatprep.subr.mxu0 0.0
        %1202 = vmatpush1.msra.mxu0 0.0
        %1203 = vmatprep.subr.mxu0 0.0
        %1204 = vmatpush1.msra.mxu0 0.0
        %1205 = vmatprep.subr.mxu0 0.0
        %1206 = vmatpush1.msra.mxu0 0.0
        %1207 = vmatprep.subr.mxu0 0.0
        %1208 = vmatpush1.msra.mxu0 0.0
        %1209 = vmatprep.subr.mxu0 0.0
        %1210 = vmatpush1.msra.mxu0 0.0
        %1211 = vmatprep.subr.mxu0 0.0
        %1212 = vmatpush1.msra.mxu0 0.0
        %1213 = vmatprep.subr.mxu0 0.0
        %1214 = vmatpush1.msra.mxu0 %v1192
        %1215 = vmatprep.subr.mxu0 0.0
        %1216 = vmatpush1.msra.mxu0 %v1191
        %1217 = vmatprep.subr.mxu0 0.0
        %1218 = vmatpush1.msra.mxu0 %v1190
        %1219 = vmatprep.subr.mxu0 0.0
        %1220 = vmatpush1.msra.mxu0 %v1189
        %1221 = vmatprep.subr.mxu0 0.0
        %1222 = vmatpush1.msra.mxu0 %v1188
        %1223 = vmatprep.subr.mxu0 0.0
        %1224 = vmatpush1.msra.mxu0 %v1187
        %1225 = vmatprep.subr.mxu0 0.0
        %1226 = vmatpush1.msra.mxu0 %v1186
        %1227 = vmatprep.subr.mxu0 0.0
        %1228 = vmatpush1.msra.mxu0 %v1185
        %1229 = vmatprep.subr.mxu0 0.0
        %1230 = vmatpush2.msra.mxu0 0.0
        %1231 = vmatprep.subr.mxu0 0.0
        %1232 = vmatpush2.msra.mxu0 0.0
        %1233 = vmatprep.subr.mxu0 0.0
        %1234 = vmatpush2.msra.mxu0 0.0
        %1235 = vmatprep.subr.mxu0 0.0
        %1236 = vmatpush2.msra.mxu0 0.0
        %1237 = vmatprep.subr.mxu0 0.0
        %1238 = vmatpush2.msra.mxu0 0.0
        %1239 = vmatprep.subr.mxu0 0.0
        %1240 = vmatpush2.msra.mxu0 0.0
        %1241 = vmatprep.subr.mxu0 0.0
        %1242 = vmatpush2.msra.mxu0 0.0
        %1243 = vmatprep.subr.mxu0 0.0
        %1244 = vmatpush2.msra.mxu0 0.0
        %1245 = vmatprep.subr.mxu0 0.0
        %1246 = vmatpush2.msra.mxu0 0.0
        %1247 = vmatprep.subr.mxu0 0.0
        %1248 = vmatpush2.msra.mxu0 0.0
        %1249 = vmatprep.subr.mxu0 0.0
        %1250 = vmatpush2.msra.mxu0 0.0
        %1251 = vmatprep.subr.mxu0 0.0
        %1252 = vmatpush2.msra.mxu0 0.0
        %1253 = vmatprep.subr.mxu0 0.0
        %1254 = vmatpush2.msra.mxu0 0.0
        %1255 = vmatprep.subr.mxu0 0.0
        %1256 = vmatpush2.msra.mxu0 0.0
        %1257 = vmatprep.subr.mxu0 0.0
        %1258 = vmatpush2.msra.mxu0 0.0
        %1259 = vmatprep.subr.mxu0 0.0
        %1260 = vmatpush2.msra.mxu0 0.0
        %1261 = vmatprep.mubr.f32.mxu0 0.0
        %1262 = vmatmul.mubr.f32.gmra.mxu0 %v1195
        %v1263 = vpop.f32.mrf.mxu0
        %v1264 = vadd.f32 0.0, %v1263
        %v1265 = vpop.f32.mrf.mxu0
        %1266 = vdwg.mxu0
        %v1267 = vld [vmem:[#allocation9] sm:$0xff]
        %v1268 = vmul.f32 %v1264, %v1267
        %v1269 = vadd.f32 %v1184, %v1268
        %v1270 = vlaneseq
        %v1271 = vshrl.u32 %v1270, 7
        %v1272 = vlaneseq
        %v1273 = vand.u32 %v1272, 127
        %vm1274 = vcmp.le.s32.totalorder %v1273, %v1271
        %vm1275 = vcmask 261120
        %v1277 = vsel %vm1275, %v1182, 0
        %v1280 = vsel %vm1275, %v1269, 0
        %1282 = vmatprep.subr.mxu0 0.0
        %1283 = vmatpush1.xpose.msra.mxu0 0.0
        %1284 = vmatprep.subr.mxu0 0.0
        %1285 = vmatpush1.xpose.msra.mxu0 0.0
        %1286 = vmatprep.subr.mxu0 0.0
        %1287 = vmatpush1.xpose.msra.mxu0 0.0
        %1288 = vmatprep.subr.mxu0 0.0
        %1289 = vmatpush1.xpose.msra.mxu0 0.0
        %1290 = vmatprep.subr.mxu0 0.0
        %1291 = vmatpush1.xpose.msra.mxu0 0.0
        %1292 = vmatprep.subr.mxu0 0.0
        %1293 = vmatpush1.xpose.msra.mxu0 0.0
        %1294 = vmatprep.subr.mxu0 0.0
        %1295 = vmatpush1.xpose.msra.mxu0 0.0
        %1296 = vmatprep.subr.mxu0 0.0
        %1297 = vmatpush1.xpose.msra.mxu0 0.0
        %1298 = vmatprep.subr.mxu0 0.0
        %1299 = vmatpush1.xpose.msra.mxu0 0.0
        %1300 = vmatprep.subr.mxu0 0.0
        %1301 = vmatpush1.xpose.msra.mxu0 0.0
        %1302 = vmatprep.subr.mxu0 0.0
        %1303 = vmatpush1.xpose.msra.mxu0 0.0
        %1304 = vmatprep.subr.mxu0 0.0
        %1305 = vmatpush1.xpose.msra.mxu0 0.0
        %1306 = vmatprep.subr.mxu0 0.0
        %1307 = vmatpush1.xpose.msra.mxu0 0.0
        %1308 = vmatprep.subr.mxu0 0.0
        %1309 = vmatpush1.xpose.msra.mxu0 0.0
        %1310 = vmatprep.subr.mxu0 0.0
        %1311 = vmatpush1.xpose.msra.mxu0 0.0
        %1312 = vmatprep.subr.mxu0 0.0
        %1313 = vmatpush1.xpose.msra.mxu0 %v1280
        %1314 = vmatprep.subr.mxu0 0.0
        %1315 = vmatpush2.xpose.msra.mxu0 0.0
        %1316 = vmatprep.subr.mxu0 0.0
        %1317 = vmatpush2.xpose.msra.mxu0 0.0
        %1318 = vmatprep.subr.mxu0 0.0
        %1319 = vmatpush2.xpose.msra.mxu0 0.0
        %1320 = vmatprep.subr.mxu0 0.0
        %1321 = vmatpush2.xpose.msra.mxu0 0.0
        %1322 = vmatprep.subr.mxu0 0.0
        %1323 = vmatpush2.xpose.msra.mxu0 0.0
        %1324 = vmatprep.subr.mxu0 0.0
        %1325 = vmatpush2.xpose.msra.mxu0 0.0
        %1326 = vmatprep.subr.mxu0 0.0
        %1327 = vmatpush2.xpose.msra.mxu0 0.0
        %1328 = vmatprep.subr.mxu0 0.0
        %1329 = vmatpush2.xpose.msra.mxu0 0.0
        %1330 = vmatprep.subr.mxu0 0.0
        %1331 = vmatpush2.xpose.msra.mxu0 0.0
        %1332 = vmatprep.subr.mxu0 0.0
        %1333 = vmatpush2.xpose.msra.mxu0 0.0
        %1334 = vmatprep.subr.mxu0 0.0
        %1335 = vmatpush2.xpose.msra.mxu0 0.0
        %1336 = vmatprep.subr.mxu0 0.0
        %1337 = vmatpush2.xpose.msra.mxu0 0.0
        %1338 = vmatprep.subr.mxu0 0.0
        %1339 = vmatpush2.xpose.msra.mxu0 0.0
        %1340 = vmatprep.subr.mxu0 0.0
        %1341 = vmatpush2.xpose.msra.mxu0 0.0
        %1342 = vmatprep.subr.mxu0 0.0
        %1343 = vmatpush2.xpose.msra.mxu0 0.0
        %1344 = vmatprep.subr.mxu0 0.0
        %1345 = vmatpush2.xpose.msra.mxu0 0.0
        %1346 = vmatprep.mubr.f32.mxu0 0.0
        %1347 = vmatmul.mubr.f32.gmra.mxu0 %v1277
        %v1348 = vpop.f32.mrf.mxu0
        %v1349 = vadd.f32 0.0, %v1348
        %v1350 = vpop.f32.mrf.mxu0
        %1351 = vdwg.mxu0
        %v1352 = vmul.f32 %v1349, 0.17677669
        %v1353 = vsel %vm1274, %v1352, -1e+30
        %vm1354 = vcmask 64512
        %v1355 = vsel %vm1354, %v1353, -inf
        %1356 = vmax.xlane.f32.xlu0 %v1355
        %v1357 = vpop.xlane.xlu0 %1356
        %v1358 = vsub.f32 %v1353, %v1357
        %v1359 = vmul.f32 %v1358, 1.442695
        %v1360 = vpow.pop %v1359
        %v1361 = vsel %vm1354, %v1360, 0.0
        %1362 = vadd.xlane.f32.xlu0 %v1361
        %v1363 = vpop.xlane.xlu0 %1362
        %v1364 = vrcp.pop %v1363
        %v1365 = vmul.f32 %v1360, %v1364
        %v1367 = vsel %vm1354, %v1365, 0
        %1369 = vmatprep.subr.mxu0 0.0
        %1370 = vmatpush1.msra.mxu0 0.0
        %1371 = vmatprep.subr.mxu0 0.0
        %1372 = vmatpush1.msra.mxu0 0.0
        %1373 = vmatprep.subr.mxu0 0.0
        %1374 = vmatpush1.msra.mxu0 0.0
        %1375 = vmatprep.subr.mxu0 0.0
        %1376 = vmatpush1.msra.mxu0 0.0
        %1377 = vmatprep.subr.mxu0 0.0
        %1378 = vmatpush1.msra.mxu0 0.0
        %1379 = vmatprep.subr.mxu0 0.0
        %1380 = vmatpush1.msra.mxu0 0.0
        %1381 = vmatprep.subr.mxu0 0.0
        %1382 = vmatpush1.msra.mxu0 0.0
        %1383 = vmatprep.subr.mxu0 0.0
        %1384 = vmatpush1.msra.mxu0 0.0
        %1385 = vmatprep.subr.mxu0 0.0
        %1386 = vmatpush1.msra.mxu0 0.0
        %1387 = vmatprep.subr.mxu0 0.0
        %1388 = vmatpush1.msra.mxu0 0.0
        %1389 = vmatprep.subr.mxu0 0.0
        %1390 = vmatpush1.msra.mxu0 0.0
        %1391 = vmatprep.subr.mxu0 0.0
        %1392 = vmatpush1.msra.mxu0 0.0
        %1393 = vmatprep.subr.mxu0 0.0
        %1394 = vmatpush1.msra.mxu0 0.0
        %1395 = vmatprep.subr.mxu0 0.0
        %1396 = vmatpush1.msra.mxu0 0.0
        %1397 = vmatprep.subr.mxu0 0.0
        %1398 = vmatpush1.msra.mxu0 0.0
        %1399 = vmatprep.subr.mxu0 0.0
        %1400 = vmatpush1.msra.mxu0 %v1089
        %1401 = vmatprep.subr.mxu0 0.0
        %1402 = vmatpush2.msra.mxu0 0.0
        %1403 = vmatprep.subr.mxu0 0.0
        %1404 = vmatpush2.msra.mxu0 0.0
        %1405 = vmatprep.subr.mxu0 0.0
        %1406 = vmatpush2.msra.mxu0 0.0
        %1407 = vmatprep.subr.mxu0 0.0
        %1408 = vmatpush2.msra.mxu0 0.0
        %1409 = vmatprep.subr.mxu0 0.0
        %1410 = vmatpush2.msra.mxu0 0.0
        %1411 = vmatprep.subr.mxu0 0.0
        %1412 = vmatpush2.msra.mxu0 0.0
        %1413 = vmatprep.subr.mxu0 0.0
        %1414 = vmatpush2.msra.mxu0 0.0
        %1415 = vmatprep.subr.mxu0 0.0
        %1416 = vmatpush2.msra.mxu0 0.0
        %1417 = vmatprep.subr.mxu0 0.0
        %1418 = vmatpush2.msra.mxu0 0.0
        %1419 = vmatprep.subr.mxu0 0.0
        %1420 = vmatpush2.msra.mxu0 0.0
        %1421 = vmatprep.subr.mxu0 0.0
        %1422 = vmatpush2.msra.mxu0 0.0
        %1423 = vmatprep.subr.mxu0 0.0
        %1424 = vmatpush2.msra.mxu0 0.0
        %1425 = vmatprep.subr.mxu0 0.0
        %1426 = vmatpush2.msra.mxu0 0.0
        %1427 = vmatprep.subr.mxu0 0.0
        %1428 = vmatpush2.msra.mxu0 0.0
        %1429 = vmatprep.subr.mxu0 0.0
        %1430 = vmatpush2.msra.mxu0 0.0
        %1431 = vmatprep.subr.mxu0 0.0
        %1432 = vmatpush2.msra.mxu0 0.0
        %1433 = vmatprep.mubr.f32.mxu0 0.0
        %1434 = vmatmul.mubr.f32.gmra.mxu0 %v1367
        %v1435 = vpop.f32.mrf.mxu0
        %v1436 = vadd.f32 0.0, %v1435
        %v1437 = vpop.f32.mrf.mxu0
        %1438 = vdwg.mxu0
        %1439 = vrot.lane.b32.xlu0 %v1182, 96
        %v1440 = vpop.permute.xlu0 %1439
        %v1441 = vsel %vm1275, %v1440, 0
        %1443 = vmatprep.subr.mxu0 0.0
        %1444 = vmatpush1.xpose.msra.mxu0 0.0
        %1445 = vmatprep.subr.mxu0 0.0
        %1446 = vmatpush1.xpose.msra.mxu0 0.0
        %1447 = vmatprep.subr.mxu0 0.0
        %1448 = vmatpush1.xpose.msra.mxu0 0.0
        %1449 = vmatprep.subr.mxu0 0.0
        %1450 = vmatpush1.xpose.msra.mxu0 0.0
        %1451 = vmatprep.subr.mxu0 0.0
        %1452 = vmatpush1.xpose.msra.mxu0 0.0
        %1453 = vmatprep.subr.mxu0 0.0
        %1454 = vmatpush1.xpose.msra.mxu0 0.0
        %1455 = vmatprep.subr.mxu0 0.0
        %1456 = vmatpush1.xpose.msra.mxu0 0.0
        %1457 = vmatprep.subr.mxu0 0.0
        %1458 = vmatpush1.xpose.msra.mxu0 0.0
        %1459 = vmatprep.subr.mxu0 0.0
        %1460 = vmatpush1.xpose.msra.mxu0 0.0
        %1461 = vmatprep.subr.mxu0 0.0
        %1462 = vmatpush1.xpose.msra.mxu0 0.0
        %1463 = vmatprep.subr.mxu0 0.0
        %1464 = vmatpush1.xpose.msra.mxu0 0.0
        %1465 = vmatprep.subr.mxu0 0.0
        %1466 = vmatpush1.xpose.msra.mxu0 0.0
        %1467 = vmatprep.subr.mxu0 0.0
        %1468 = vmatpush1.xpose.msra.mxu0 0.0
        %1469 = vmatprep.subr.mxu0 0.0
        %1470 = vmatpush1.xpose.msra.mxu0 0.0
        %1471 = vmatprep.subr.mxu0 0.0
        %1472 = vmatpush1.xpose.msra.mxu0 0.0
        %1473 = vmatprep.subr.mxu0 0.0
        %1474 = vmatpush1.xpose.msra.mxu0 %v1280
        %1475 = vmatprep.subr.mxu0 0.0
        %1476 = vmatpush2.xpose.msra.mxu0 0.0
        %1477 = vmatprep.subr.mxu0 0.0
        %1478 = vmatpush2.xpose.msra.mxu0 0.0
        %1479 = vmatprep.subr.mxu0 0.0
        %1480 = vmatpush2.xpose.msra.mxu0 0.0
        %1481 = vmatprep.subr.mxu0 0.0
        %1482 = vmatpush2.xpose.msra.mxu0 0.0
        %1483 = vmatprep.subr.mxu0 0.0
        %1484 = vmatpush2.xpose.msra.mxu0 0.0
        %1485 = vmatprep.subr.mxu0 0.0
        %1486 = vmatpush2.xpose.msra.mxu0 0.0
        %1487 = vmatprep.subr.mxu0 0.0
        %1488 = vmatpush2.xpose.msra.mxu0 0.0
        %1489 = vmatprep.subr.mxu0 0.0
        %1490 = vmatpush2.xpose.msra.mxu0 0.0
        %1491 = vmatprep.subr.mxu0 0.0
        %1492 = vmatpush2.xpose.msra.mxu0 0.0
        %1493 = vmatprep.subr.mxu0 0.0
        %1494 = vmatpush2.xpose.msra.mxu0 0.0
        %1495 = vmatprep.subr.mxu0 0.0
        %1496 = vmatpush2.xpose.msra.mxu0 0.0
        %1497 = vmatprep.subr.mxu0 0.0
        %1498 = vmatpush2.xpose.msra.mxu0 0.0
        %1499 = vmatprep.subr.mxu0 0.0
        %1500 = vmatpush2.xpose.msra.mxu0 0.0
        %1501 = vmatprep.subr.mxu0 0.0
        %1502 = vmatpush2.xpose.msra.mxu0 0.0
        %1503 = vmatprep.subr.mxu0 0.0
        %1504 = vmatpush2.xpose.msra.mxu0 0.0
        %1505 = vmatprep.subr.mxu0 0.0
        %1506 = vmatpush2.xpose.msra.mxu0 0.0
        %1507 = vmatprep.mubr.f32.mxu0 0.0
        %1508 = vmatmul.mubr.f32.gmra.mxu0 %v1441
        %v1509 = vpop.f32.mrf.mxu0
        %v1510 = vadd.f32 0.0, %v1509
        %v1511 = vpop.f32.mrf.mxu0
        %1512 = vdwg.mxu0
        %v1513 = vmul.f32 %v1510, 0.17677669
        %v1514 = vsel %vm1274, %v1513, -1e+30
        %v1515 = vsel %vm1354, %v1514, -inf
        %1516 = vmax.xlane.f32.xlu0 %v1515
        %v1517 = vpop.xlane.xlu0 %1516
        %v1518 = vsub.f32 %v1514, %v1517
        %v1519 = vmul.f32 %v1518, 1.442695
        %v1520 = vpow.pop %v1519
        %v1521 = vsel %vm1354, %v1520, 0.0
        %1522 = vadd.xlane.f32.xlu0 %v1521
        %v1523 = vpop.xlane.xlu0 %1522
        %v1524 = vrcp.pop %v1523
        %v1525 = vmul.f32 %v1520, %v1524
        %v1527 = vsel %vm1354, %v1525, 0
        %1529 = vmatprep.subr.mxu0 0.0
        %1530 = vmatpush1.msra.mxu0 0.0
        %1531 = vmatprep.subr.mxu0 0.0
        %1532 = vmatpush1.msra.mxu0 0.0
        %1533 = vmatprep.subr.mxu0 0.0
        %1534 = vmatpush1.msra.mxu0 0.0
        %1535 = vmatprep.subr.mxu0 0.0
        %1536 = vmatpush1.msra.mxu0 0.0
        %1537 = vmatprep.subr.mxu0 0.0
        %1538 = vmatpush1.msra.mxu0 0.0
        %1539 = vmatprep.subr.mxu0 0.0
        %1540 = vmatpush1.msra.mxu0 0.0
        %1541 = vmatprep.subr.mxu0 0.0
        %1542 = vmatpush1.msra.mxu0 0.0
        %1543 = vmatprep.subr.mxu0 0.0
        %1544 = vmatpush1.msra.mxu0 0.0
        %1545 = vmatprep.subr.mxu0 0.0
        %1546 = vmatpush1.msra.mxu0 0.0
        %1547 = vmatprep.subr.mxu0 0.0
        %1548 = vmatpush1.msra.mxu0 0.0
        %1549 = vmatprep.subr.mxu0 0.0
        %1550 = vmatpush1.msra.mxu0 0.0
        %1551 = vmatprep.subr.mxu0 0.0
        %1552 = vmatpush1.msra.mxu0 0.0
        %1553 = vmatprep.subr.mxu0 0.0
        %1554 = vmatpush1.msra.mxu0 0.0
        %1555 = vmatprep.subr.mxu0 0.0
        %1556 = vmatpush1.msra.mxu0 0.0
        %1557 = vmatprep.subr.mxu0 0.0
        %1558 = vmatpush1.msra.mxu0 0.0
        %1559 = vmatprep.subr.mxu0 0.0
        %1560 = vmatpush1.msra.mxu0 %v1089
        %1561 = vmatprep.subr.mxu0 0.0
        %1562 = vmatpush2.msra.mxu0 0.0
        %1563 = vmatprep.subr.mxu0 0.0
        %1564 = vmatpush2.msra.mxu0 0.0
        %1565 = vmatprep.subr.mxu0 0.0
        %1566 = vmatpush2.msra.mxu0 0.0
        %1567 = vmatprep.subr.mxu0 0.0
        %1568 = vmatpush2.msra.mxu0 0.0
        %1569 = vmatprep.subr.mxu0 0.0
        %1570 = vmatpush2.msra.mxu0 0.0
        %1571 = vmatprep.subr.mxu0 0.0
        %1572 = vmatpush2.msra.mxu0 0.0
        %1573 = vmatprep.subr.mxu0 0.0
        %1574 = vmatpush2.msra.mxu0 0.0
        %1575 = vmatprep.subr.mxu0 0.0
        %1576 = vmatpush2.msra.mxu0 0.0
        %1577 = vmatprep.subr.mxu0 0.0
        %1578 = vmatpush2.msra.mxu0 0.0
        %1579 = vmatprep.subr.mxu0 0.0
        %1580 = vmatpush2.msra.mxu0 0.0
        %1581 = vmatprep.subr.mxu0 0.0
        %1582 = vmatpush2.msra.mxu0 0.0
        %1583 = vmatprep.subr.mxu0 0.0
        %1584 = vmatpush2.msra.mxu0 0.0
        %1585 = vmatprep.subr.mxu0 0.0
        %1586 = vmatpush2.msra.mxu0 0.0
        %1587 = vmatprep.subr.mxu0 0.0
        %1588 = vmatpush2.msra.mxu0 0.0
        %1589 = vmatprep.subr.mxu0 0.0
        %1590 = vmatpush2.msra.mxu0 0.0
        %1591 = vmatprep.subr.mxu0 0.0
        %1592 = vmatpush2.msra.mxu0 0.0
        %1593 = vmatprep.mubr.f32.mxu0 0.0
        %1594 = vmatmul.mubr.f32.gmra.mxu0 %v1527
        %v1595 = vpop.f32.mrf.mxu0
        %v1596 = vadd.f32 0.0, %v1595
        %v1597 = vpop.f32.mrf.mxu0
        %1598 = vdwg.mxu0
        %1599 = vrot.lane.b32.xlu0 %v1182, 64
        %v1600 = vpop.permute.xlu0 %1599
        %1601 = vrot.lane.b32.xlu0 %v1269, 96
        %v1602 = vpop.permute.xlu0 %1601
        %v1603 = vsel %vm1275, %v1600, 0
        %v1605 = vsel %vm1275, %v1602, 0
        %1607 = vmatprep.subr.mxu0 0.0
        %1608 = vmatpush1.xpose.msra.mxu0 0.0
        %1609 = vmatprep.subr.mxu0 0.0
        %1610 = vmatpush1.xpose.msra.mxu0 0.0
        %1611 = vmatprep.subr.mxu0 0.0
        %1612 = vmatpush1.xpose.msra.mxu0 0.0
        %1613 = vmatprep.subr.mxu0 0.0
        %1614 = vmatpush1.xpose.msra.mxu0 0.0
        %1615 = vmatprep.subr.mxu0 0.0
        %1616 = vmatpush1.xpose.msra.mxu0 0.0
        %1617 = vmatprep.subr.mxu0 0.0
        %1618 = vmatpush1.xpose.msra.mxu0 0.0
        %1619 = vmatprep.subr.mxu0 0.0
        %1620 = vmatpush1.xpose.msra.mxu0 0.0
        %1621 = vmatprep.subr.mxu0 0.0
        %1622 = vmatpush1.xpose.msra.mxu0 0.0
        %1623 = vmatprep.subr.mxu0 0.0
        %1624 = vmatpush1.xpose.msra.mxu0 0.0
        %1625 = vmatprep.subr.mxu0 0.0
        %1626 = vmatpush1.xpose.msra.mxu0 0.0
        %1627 = vmatprep.subr.mxu0 0.0
        %1628 = vmatpush1.xpose.msra.mxu0 0.0
        %1629 = vmatprep.subr.mxu0 0.0
        %1630 = vmatpush1.xpose.msra.mxu0 0.0
        %1631 = vmatprep.subr.mxu0 0.0
        %1632 = vmatpush1.xpose.msra.mxu0 0.0
        %1633 = vmatprep.subr.mxu0 0.0
        %1634 = vmatpush1.xpose.msra.mxu0 0.0
        %1635 = vmatprep.subr.mxu0 0.0
        %1636 = vmatpush1.xpose.msra.mxu0 0.0
        %1637 = vmatprep.subr.mxu0 0.0
        %1638 = vmatpush1.xpose.msra.mxu0 %v1605
        %1639 = vmatprep.subr.mxu0 0.0
        %1640 = vmatpush2.xpose.msra.mxu0 0.0
        %1641 = vmatprep.subr.mxu0 0.0
        %1642 = vmatpush2.xpose.msra.mxu0 0.0
        %1643 = vmatprep.subr.mxu0 0.0
        %1644 = vmatpush2.xpose.msra.mxu0 0.0
        %1645 = vmatprep.subr.mxu0 0.0
        %1646 = vmatpush2.xpose.msra.mxu0 0.0
        %1647 = vmatprep.subr.mxu0 0.0
        %1648 = vmatpush2.xpose.msra.mxu0 0.0
        %1649 = vmatprep.subr.mxu0 0.0
        %1650 = vmatpush2.xpose.msra.mxu0 0.0
        %1651 = vmatprep.subr.mxu0 0.0
        %1652 = vmatpush2.xpose.msra.mxu0 0.0
        %1653 = vmatprep.subr.mxu0 0.0
        %1654 = vmatpush2.xpose.msra.mxu0 0.0
        %1655 = vmatprep.subr.mxu0 0.0
        %1656 = vmatpush2.xpose.msra.mxu0 0.0
        %1657 = vmatprep.subr.mxu0 0.0
        %1658 = vmatpush2.xpose.msra.mxu0 0.0
        %1659 = vmatprep.subr.mxu0 0.0
        %1660 = vmatpush2.xpose.msra.mxu0 0.0
        %1661 = vmatprep.subr.mxu0 0.0
        %1662 = vmatpush2.xpose.msra.mxu0 0.0
        %1663 = vmatprep.subr.mxu0 0.0
        %1664 = vmatpush2.xpose.msra.mxu0 0.0
        %1665 = vmatprep.subr.mxu0 0.0
        %1666 = vmatpush2.xpose.msra.mxu0 0.0
        %1667 = vmatprep.subr.mxu0 0.0
        %1668 = vmatpush2.xpose.msra.mxu0 0.0
        %1669 = vmatprep.subr.mxu0 0.0
        %1670 = vmatpush2.xpose.msra.mxu0 0.0
        %1671 = vmatprep.mubr.f32.mxu0 0.0
        %1672 = vmatmul.mubr.f32.gmra.mxu0 %v1603
        %v1673 = vpop.f32.mrf.mxu0
        %v1674 = vadd.f32 0.0, %v1673
        %v1675 = vpop.f32.mrf.mxu0
        %1676 = vdwg.mxu0
        %v1677 = vmul.f32 %v1674, 0.17677669
        %v1678 = vsel %vm1274, %v1677, -1e+30
        %v1679 = vsel %vm1354, %v1678, -inf
        %1680 = vmax.xlane.f32.xlu0 %v1679
        %v1681 = vpop.xlane.xlu0 %1680
        %v1682 = vsub.f32 %v1678, %v1681
        %v1683 = vmul.f32 %v1682, 1.442695
        %v1684 = vpow.pop %v1683
        %v1685 = vsel %vm1354, %v1684, 0.0
        %1686 = vadd.xlane.f32.xlu0 %v1685
        %v1687 = vpop.xlane.xlu0 %1686
        %v1688 = vrcp.pop %v1687
        %v1689 = vmul.f32 %v1684, %v1688
        %1691 = vrot.lane.b32.xlu0 %v1089, 96
        %v1692 = vpop.permute.xlu0 %1691
        %v1695 = vsel %vm1354, %v1689, 0
        %1697 = vmatprep.subr.mxu0 0.0
        %1698 = vmatpush1.msra.mxu0 0.0
        %1699 = vmatprep.subr.mxu0 0.0
        %1700 = vmatpush1.msra.mxu0 0.0
        %1701 = vmatprep.subr.mxu0 0.0
        %1702 = vmatpush1.msra.mxu0 0.0
        %1703 = vmatprep.subr.mxu0 0.0
        %1704 = vmatpush1.msra.mxu0 0.0
        %1705 = vmatprep.subr.mxu0 0.0
        %1706 = vmatpush1.msra.mxu0 0.0
        %1707 = vmatprep.subr.mxu0 0.0
        %1708 = vmatpush1.msra.mxu0 0.0
        %1709 = vmatprep.subr.mxu0 0.0
        %1710 = vmatpush1.msra.mxu0 0.0
        %1711 = vmatprep.subr.mxu0 0.0
        %1712 = vmatpush1.msra.mxu0 0.0
        %1713 = vmatprep.subr.mxu0 0.0
        %1714 = vmatpush1.msra.mxu0 0.0
        %1715 = vmatprep.subr.mxu0 0.0
        %1716 = vmatpush1.msra.mxu0 0.0
        %1717 = vmatprep.subr.mxu0 0.0
        %1718 = vmatpush1.msra.mxu0 0.0
        %1719 = vmatprep.subr.mxu0 0.0
        %1720 = vmatpush1.msra.mxu0 0.0
        %1721 = vmatprep.subr.mxu0 0.0
        %1722 = vmatpush1.msra.mxu0 0.0
        %1723 = vmatprep.subr.mxu0 0.0
        %1724 = vmatpush1.msra.mxu0 0.0
        %1725 = vmatprep.subr.mxu0 0.0
        %1726 = vmatpush1.msra.mxu0 0.0
        %1727 = vmatprep.subr.mxu0 0.0
        %1728 = vmatpush1.msra.mxu0 %v1692
        %1729 = vmatprep.subr.mxu0 0.0
        %1730 = vmatpush2.msra.mxu0 0.0
        %1731 = vmatprep.subr.mxu0 0.0
        %1732 = vmatpush2.msra.mxu0 0.0
        %1733 = vmatprep.subr.mxu0 0.0
        %1734 = vmatpush2.msra.mxu0 0.0
        %1735 = vmatprep.subr.mxu0 0.0
        %1736 = vmatpush2.msra.mxu0 0.0
        %1737 = vmatprep.subr.mxu0 0.0
        %1738 = vmatpush2.msra.mxu0 0.0
        %1739 = vmatprep.subr.mxu0 0.0
        %1740 = vmatpush2.msra.mxu0 0.0
        %1741 = vmatprep.subr.mxu0 0.0
        %1742 = vmatpush2.msra.mxu0 0.0
        %1743 = vmatprep.subr.mxu0 0.0
        %1744 = vmatpush2.msra.mxu0 0.0
        %1745 = vmatprep.subr.mxu0 0.0
        %1746 = vmatpush2.msra.mxu0 0.0
        %1747 = vmatprep.subr.mxu0 0.0
        %1748 = vmatpush2.msra.mxu0 0.0
        %1749 = vmatprep.subr.mxu0 0.0
        %1750 = vmatpush2.msra.mxu0 0.0
        %1751 = vmatprep.subr.mxu0 0.0
        %1752 = vmatpush2.msra.mxu0 0.0
        %1753 = vmatprep.subr.mxu0 0.0
        %1754 = vmatpush2.msra.mxu0 0.0
        %1755 = vmatprep.subr.mxu0 0.0
        %1756 = vmatpush2.msra.mxu0 0.0
        %1757 = vmatprep.subr.mxu0 0.0
        %1758 = vmatpush2.msra.mxu0 0.0
        %1759 = vmatprep.subr.mxu0 0.0
        %1760 = vmatpush2.msra.mxu0 0.0
        %1761 = vmatprep.mubr.f32.mxu0 0.0
        %1762 = vmatmul.mubr.f32.gmra.mxu0 %v1695
        %v1763 = vpop.f32.mrf.mxu0
        %v1764 = vadd.f32 0.0, %v1763
        %v1765 = vpop.f32.mrf.mxu0
        %1766 = vdwg.mxu0
        %1767 = vrot.lane.b32.xlu0 %v1182, 32
        %v1768 = vpop.permute.xlu0 %1767
        %v1769 = vsel %vm1275, %v1768, 0
        %1771 = vmatprep.subr.mxu0 0.0
        %1772 = vmatpush1.xpose.msra.mxu0 0.0
        %1773 = vmatprep.subr.mxu0 0.0
        %1774 = vmatpush1.xpose.msra.mxu0 0.0
        %1775 = vmatprep.subr.mxu0 0.0
        %1776 = vmatpush1.xpose.msra.mxu0 0.0
        %1777 = vmatprep.subr.mxu0 0.0
        %1778 = vmatpush1.xpose.msra.mxu0 0.0
        %1779 = vmatprep.subr.mxu0 0.0
        %1780 = vmatpush1.xpose.msra.mxu0 0.0
        %1781 = vmatprep.subr.mxu0 0.0
        %1782 = vmatpush1.xpose.msra.mxu0 0.0
        %1783 = vmatprep.subr.mxu0 0.0
        %1784 = vmatpush1.xpose.msra.mxu0 0.0
        %1785 = vmatprep.subr.mxu0 0.0
        %1786 = vmatpush1.xpose.msra.mxu0 0.0
        %1787 = vmatprep.subr.mxu0 0.0
        %1788 = vmatpush1.xpose.msra.mxu0 0.0
        %1789 = vmatprep.subr.mxu0 0.0
        %1790 = vmatpush1.xpose.msra.mxu0 0.0
        %1791 = vmatprep.subr.mxu0 0.0
        %1792 = vmatpush1.xpose.msra.mxu0 0.0
        %1793 = vmatprep.subr.mxu0 0.0
        %1794 = vmatpush1.xpose.msra.mxu0 0.0
        %1795 = vmatprep.subr.mxu0 0.0
        %1796 = vmatpush1.xpose.msra.mxu0 0.0
        %1797 = vmatprep.subr.mxu0 0.0
        %1798 = vmatpush1.xpose.msra.mxu0 0.0
        %1799 = vmatprep.subr.mxu0 0.0
        %1800 = vmatpush1.xpose.msra.mxu0 0.0
        %1801 = vmatprep.subr.mxu0 0.0
        %1802 = vmatpush1.xpose.msra.mxu0 %v1605
        %1803 = vmatprep.subr.mxu0 0.0
        %1804 = vmatpush2.xpose.msra.mxu0 0.0
        %1805 = vmatprep.subr.mxu0 0.0
        %1806 = vmatpush2.xpose.msra.mxu0 0.0
        %1807 = vmatprep.subr.mxu0 0.0
        %1808 = vmatpush2.xpose.msra.mxu0 0.0
        %1809 = vmatprep.subr.mxu0 0.0
        %1810 = vmatpush2.xpose.msra.mxu0 0.0
        %1811 = vmatprep.subr.mxu0 0.0
        %1812 = vmatpush2.xpose.msra.mxu0 0.0
        %1813 = vmatprep.subr.mxu0 0.0
        %1814 = vmatpush2.xpose.msra.mxu0 0.0
        %1815 = vmatprep.subr.mxu0 0.0
        %1816 = vmatpush2.xpose.msra.mxu0 0.0
        %1817 = vmatprep.subr.mxu0 0.0
        %1818 = vmatpush2.xpose.msra.mxu0 0.0
        %1819 = vmatprep.subr.mxu0 0.0
        %1820 = vmatpush2.xpose.msra.mxu0 0.0
        %1821 = vmatprep.subr.mxu0 0.0
        %1822 = vmatpush2.xpose.msra.mxu0 0.0
        %1823 = vmatprep.subr.mxu0 0.0
        %1824 = vmatpush2.xpose.msra.mxu0 0.0
        %1825 = vmatprep.subr.mxu0 0.0
        %1826 = vmatpush2.xpose.msra.mxu0 0.0
        %1827 = vmatprep.subr.mxu0 0.0
        %1828 = vmatpush2.xpose.msra.mxu0 0.0
        %1829 = vmatprep.subr.mxu0 0.0
        %1830 = vmatpush2.xpose.msra.mxu0 0.0
        %1831 = vmatprep.subr.mxu0 0.0
        %1832 = vmatpush2.xpose.msra.mxu0 0.0
        %1833 = vmatprep.subr.mxu0 0.0
        %1834 = vmatpush2.xpose.msra.mxu0 0.0
        %1835 = vmatprep.mubr.f32.mxu0 0.0
        %1836 = vmatmul.mubr.f32.gmra.mxu0 %v1769
        %v1837 = vpop.f32.mrf.mxu0
        %v1838 = vadd.f32 0.0, %v1837
        %v1839 = vpop.f32.mrf.mxu0
        %1840 = vdwg.mxu0
        %v1841 = vmul.f32 %v1838, 0.17677669
        %v1842 = vsel %vm1274, %v1841, -1e+30
        %v1843 = vsel %vm1354, %v1842, -inf
        %1844 = vmax.xlane.f32.xlu0 %v1843
        %v1845 = vpop.xlane.xlu0 %1844
        %v1846 = vsub.f32 %v1842, %v1845
        %v1847 = vmul.f32 %v1846, 1.442695
        %v1848 = vpow.pop %v1847
        %v1849 = vsel %vm1354, %v1848, 0.0
        %1850 = vadd.xlane.f32.xlu0 %v1849
        %v1851 = vpop.xlane.xlu0 %1850
        %v1852 = vrcp.pop %v1851
        %v1853 = vmul.f32 %v1848, %v1852
        %v1855 = vsel %vm1354, %v1853, 0
        %1857 = vmatprep.subr.mxu0 0.0
        %1858 = vmatpush1.msra.mxu0 0.0
        %1859 = vmatprep.subr.mxu0 0.0
        %1860 = vmatpush1.msra.mxu0 0.0
        %1861 = vmatprep.subr.mxu0 0.0
        %1862 = vmatpush1.msra.mxu0 0.0
        %1863 = vmatprep.subr.mxu0 0.0
        %1864 = vmatpush1.msra.mxu0 0.0
        %1865 = vmatprep.subr.mxu0 0.0
        %1866 = vmatpush1.msra.mxu0 0.0
        %1867 = vmatprep.subr.mxu0 0.0
        %1868 = vmatpush1.msra.mxu0 0.0
        %1869 = vmatprep.subr.mxu0 0.0
        %1870 = vmatpush1.msra.mxu0 0.0
        %1871 = vmatprep.subr.mxu0 0.0
        %1872 = vmatpush1.msra.mxu0 0.0
        %1873 = vmatprep.subr.mxu0 0.0
        %1874 = vmatpush1.msra.mxu0 0.0
        %1875 = vmatprep.subr.mxu0 0.0
        %1876 = vmatpush1.msra.mxu0 0.0
        %1877 = vmatprep.subr.mxu0 0.0
        %1878 = vmatpush1.msra.mxu0 0.0
        %1879 = vmatprep.subr.mxu0 0.0
        %1880 = vmatpush1.msra.mxu0 0.0
        %1881 = vmatprep.subr.mxu0 0.0
        %1882 = vmatpush1.msra.mxu0 0.0
        %1883 = vmatprep.subr.mxu0 0.0
        %1884 = vmatpush1.msra.mxu0 0.0
        %1885 = vmatprep.subr.mxu0 0.0
        %1886 = vmatpush1.msra.mxu0 0.0
        %1887 = vmatprep.subr.mxu0 0.0
        %1888 = vmatpush1.msra.mxu0 %v1692
        %1889 = vmatprep.subr.mxu0 0.0
        %1890 = vmatpush2.msra.mxu0 0.0
        %1891 = vmatprep.subr.mxu0 0.0
        %1892 = vmatpush2.msra.mxu0 0.0
        %1893 = vmatprep.subr.mxu0 0.0
        %1894 = vmatpush2.msra.mxu0 0.0
        %1895 = vmatprep.subr.mxu0 0.0
        %1896 = vmatpush2.msra.mxu0 0.0
        %1897 = vmatprep.subr.mxu0 0.0
        %1898 = vmatpush2.msra.mxu0 0.0
        %1899 = vmatprep.subr.mxu0 0.0
        %1900 = vmatpush2.msra.mxu0 0.0
        %1901 = vmatprep.subr.mxu0 0.0
        %1902 = vmatpush2.msra.mxu0 0.0
        %1903 = vmatprep.subr.mxu0 0.0
        %1904 = vmatpush2.msra.mxu0 0.0
        %1905 = vmatprep.subr.mxu0 0.0
        %1906 = vmatpush2.msra.mxu0 0.0
        %1907 = vmatprep.subr.mxu0 0.0
        %1908 = vmatpush2.msra.mxu0 0.0
        %1909 = vmatprep.subr.mxu0 0.0
        %1910 = vmatpush2.msra.mxu0 0.0
        %1911 = vmatprep.subr.mxu0 0.0
        %1912 = vmatpush2.msra.mxu0 0.0
        %1913 = vmatprep.subr.mxu0 0.0
        %1914 = vmatpush2.msra.mxu0 0.0
        %1915 = vmatprep.subr.mxu0 0.0
        %1916 = vmatpush2.msra.mxu0 0.0
        %1917 = vmatprep.subr.mxu0 0.0
        %1918 = vmatpush2.msra.mxu0 0.0
        %1919 = vmatprep.subr.mxu0 0.0
        %1920 = vmatpush2.msra.mxu0 0.0
        %1921 = vmatprep.mubr.f32.mxu0 0.0
        %1922 = vmatmul.mubr.f32.gmra.mxu0 %v1855
        %v1923 = vpop.f32.mrf.mxu0
        %v1924 = vadd.f32 0.0, %v1923
        %v1925 = vpop.f32.mrf.mxu0
        %1926 = vdwg.mxu0
        %1928 = vrot.lane.b32.xlu0 %v1596, 32
        %v1929 = vpop.permute.xlu0 %1928
        %1932 = vrot.lane.b32.xlu0 %v1764, 64
        %v1933 = vpop.permute.xlu0 %1932
        %1936 = vrot.lane.b32.xlu0 %v1924, 96
        %v1937 = vpop.permute.xlu0 %1936
        %v1939 = vsel %vm1275, %v1436, %v1929
        %v1940 = vsel %vm1193, %v1939, %v1933
        %vm1941 = vcmask 785408
        %v1942 = vsel %vm1941, %v1940, %v1937
        %v1943 = vld [vmem:[%s681] sm:$0xff]
        %v1944 = vld [vmem:[%s681 + $0x8] sm:$0xff]
        %v1945 = vld [vmem:[%s681 + $0x10] sm:$0xff]
        %v1946 = vld [vmem:[%s681 + $0x18] sm:$0xff]
        %v1947 = vld [vmem:[%s681 + $0x20] sm:$0xff]
        %v1948 = vld [vmem:[%s681 + $0x28] sm:$0xff]
        %v1949 = vld [vmem:[%s681 + $0x30] sm:$0xff]
        %v1950 = vld [vmem:[%s681 + $0x38] sm:$0xff]
        %v1951 = vld [vmem:[%s681 + $0x40] sm:$0xff]
        %v1952 = vld [vmem:[%s681 + $0x48] sm:$0xff]
        %v1953 = vld [vmem:[%s681 + $0x50] sm:$0xff]
        %v1954 = vld [vmem:[%s681 + $0x58] sm:$0xff]
        %v1955 = vld [vmem:[%s681 + $0x60] sm:$0xff]
        %v1956 = vld [vmem:[%s681 + $0x68] sm:$0xff]
        %v1957 = vld [vmem:[%s681 + $0x70] sm:$0xff]
        %v1958 = vld [vmem:[%s681 + $0x78] sm:$0xff]
        %v1959 = vld [vmem:[#allocation3] sm:$0xff]
        %1960 = vmatprep.subr.mxu0 0.0
        %1961 = vmatpush1.msra.mxu0 %v1958
        %1962 = vmatprep.subr.mxu0 0.0
        %1963 = vmatpush1.msra.mxu0 %v1957
        %1964 = vmatprep.subr.mxu0 0.0
        %1965 = vmatpush1.msra.mxu0 %v1956
        %1966 = vmatprep.subr.mxu0 0.0
        %1967 = vmatpush1.msra.mxu0 %v1955
        %1968 = vmatprep.subr.mxu0 0.0
        %1969 = vmatpush1.msra.mxu0 %v1954
        %1970 = vmatprep.subr.mxu0 0.0
        %1971 = vmatpush1.msra.mxu0 %v1953
        %1972 = vmatprep.subr.mxu0 0.0
        %1973 = vmatpush1.msra.mxu0 %v1952
        %1974 = vmatprep.subr.mxu0 0.0
        %1975 = vmatpush1.msra.mxu0 %v1951
        %1976 = vmatprep.subr.mxu0 0.0
        %1977 = vmatpush1.msra.mxu0 %v1950
        %1978 = vmatprep.subr.mxu0 0.0
        %1979 = vmatpush1.msra.mxu0 %v1949
        %1980 = vmatprep.subr.mxu0 0.0
        %1981 = vmatpush1.msra.mxu0 %v1948
        %1982 = vmatprep.subr.mxu0 0.0
        %1983 = vmatpush1.msra.mxu0 %v1947
        %1984 = vmatprep.subr.mxu0 0.0
        %1985 = vmatpush1.msra.mxu0 %v1946
        %1986 = vmatprep.subr.mxu0 0.0
        %1987 = vmatpush1.msra.mxu0 %v1945
        %1988 = vmatprep.subr.mxu0 0.0
        %1989 = vmatpush1.msra.mxu0 %v1944
        %1990 = vmatprep.subr.mxu0 0.0
        %1991 = vmatpush1.msra.mxu0 %v1943
        %1992 = vmatprep.subr.mxu0 0.0
        %1993 = vmatpush2.msra.mxu0 0.0
        %1994 = vmatprep.subr.mxu0 0.0
        %1995 = vmatpush2.msra.mxu0 0.0
        %1996 = vmatprep.subr.mxu0 0.0
        %1997 = vmatpush2.msra.mxu0 0.0
        %1998 = vmatprep.subr.mxu0 0.0
        %1999 = vmatpush2.msra.mxu0 0.0
        %2000 = vmatprep.subr.mxu0 0.0
        %2001 = vmatpush2.msra.mxu0 0.0
        %2002 = vmatprep.subr.mxu0 0.0
        %2003 = vmatpush2.msra.mxu0 0.0
        %2004 = vmatprep.subr.mxu0 0.0
        %2005 = vmatpush2.msra.mxu0 0.0
        %2006 = vmatprep.subr.mxu0 0.0
        %2007 = vmatpush2.msra.mxu0 0.0
        %2008 = vmatprep.subr.mxu0 0.0
        %2009 = vmatpush2.msra.mxu0 0.0
        %2010 = vmatprep.subr.mxu0 0.0
        %2011 = vmatpush2.msra.mxu0 0.0
        %2012 = vmatprep.subr.mxu0 0.0
        %2013 = vmatpush2.msra.mxu0 0.0
        %2014 = vmatprep.subr.mxu0 0.0
        %2015 = vmatpush2.msra.mxu0 0.0
        %2016 = vmatprep.subr.mxu0 0.0
        %2017 = vmatpush2.msra.mxu0 0.0
        %2018 = vmatprep.subr.mxu0 0.0
        %2019 = vmatpush2.msra.mxu0 0.0
        %2020 = vmatprep.subr.mxu0 0.0
        %2021 = vmatpush2.msra.mxu0 0.0
        %2022 = vmatprep.subr.mxu0 0.0
        %2023 = vmatpush2.msra.mxu0 0.0
        %2024 = vmatprep.mubr.f32.mxu0 0.0
        %2025 = vmatmul.mubr.f32.gmra.mxu0 %v1942
        %v2026 = vpop.f32.mrf.mxu0
        %v2027 = vadd.f32 %v1959, %v2026
        %v2028 = vpop.f32.mrf.mxu0
        %2029 = vdwg.mxu0
        %2030 = vst [vmem:[#allocation3] sm:$0xff] %v2027
        %v2031 = vld [vmem:[%s801] sm:$0x1]
        %v2032 = vmul.f32 %v2027, %v2027
        %2033 = vadd.xlane.f32.xlu0 %v2032
        %v2034 = vpop.xlane.xlu0 %2033
        %v2035 = vmul.f32 %v2034, %v822
        %v2036 = vadd.f32 %v2035, 1e-05
        %v2037 = vrsqrt.pop %v2036
        %v2038 = vmul.f32 %v2027, %v2037
        %v2040 = vlaneseq
        %v2041 = vshrl.u32 %v2040, 7
        %v2042 = vsub.s32 0, %v2041
        %v2043 = vrot.slane %v2031, %v2042
        %v2045 = vmul.f32 %v2038, %v2043
        %v2046 = vld [vmem:[%s806] sm:$0xff]
        %v2047 = vld [vmem:[%s806 + $0x8] sm:$0xff]
        %v2048 = vld [vmem:[%s806 + $0x10] sm:$0xff]
        %v2049 = vld [vmem:[%s806 + $0x18] sm:$0xff]
        %v2050 = vld [vmem:[%s806 + $0x20] sm:$0xff]
        %v2051 = vld [vmem:[%s806 + $0x28] sm:$0xff]
        %v2052 = vld [vmem:[%s806 + $0x30] sm:$0xff]
        %v2053 = vld [vmem:[%s806 + $0x38] sm:$0xff]
        %v2054 = vld [vmem:[%s806 + $0x40] sm:$0xff]
        %v2055 = vld [vmem:[%s806 + $0x48] sm:$0xff]
        %v2056 = vld [vmem:[%s806 + $0x50] sm:$0xff]
        %v2057 = vld [vmem:[%s806 + $0x58] sm:$0xff]
        %v2058 = vld [vmem:[%s806 + $0x60] sm:$0xff]
        %v2059 = vld [vmem:[%s806 + $0x68] sm:$0xff]
        %v2060 = vld [vmem:[%s806 + $0x70] sm:$0xff]
        %v2061 = vld [vmem:[%s806 + $0x78] sm:$0xff]
        %v2062 = vld [vmem:[%s806 + $0x80] sm:$0xff]
        %v2063 = vld [vmem:[%s806 + $0x88] sm:$0xff]
        %v2064 = vld [vmem:[%s806 + $0x90] sm:$0xff]
        %v2065 = vld [vmem:[%s806 + $0x98] sm:$0xff]
        %v2066 = vld [vmem:[%s806 + $0xa0] sm:$0xff]
        %v2067 = vld [vmem:[%s806 + $0xa8] sm:$0xff]
        %v2068 = vld [vmem:[%s806 + $0xb0] sm:$0xff]
        %v2069 = vld [vmem:[%s806 + $0xb8] sm:$0xff]
        %v2070 = vld [vmem:[%s806 + $0xc0] sm:$0xff]
        %v2071 = vld [vmem:[%s806 + $0xc8] sm:$0xff]
        %v2072 = vld [vmem:[%s806 + $0xd0] sm:$0xff]
        %v2073 = vld [vmem:[%s806 + $0xd8] sm:$0xff]
        %v2074 = vld [vmem:[%s806 + $0xe0] sm:$0xff]
        %v2075 = vld [vmem:[%s806 + $0xe8] sm:$0xff]
        %v2076 = vld [vmem:[%s806 + $0xf0] sm:$0xff]
        %v2077 = vld [vmem:[%s806 + $0xf8] sm:$0xff]
        %2078 = vmatprep.subr.mxu0 %v2077
        %2079 = vmatpush1.msra.mxu0 %v2076
        %2080 = vmatprep.subr.mxu0 %v2075
        %2081 = vmatpush1.msra.mxu0 %v2074
        %2082 = vmatprep.subr.mxu0 %v2073
        %2083 = vmatpush1.msra.mxu0 %v2072
        %2084 = vmatprep.subr.mxu0 %v2071
        %2085 = vmatpush1.msra.mxu0 %v2070
        %2086 = vmatprep.subr.mxu0 %v2069
        %2087 = vmatpush1.msra.mxu0 %v2068
        %2088 = vmatprep.subr.mxu0 %v2067
        %2089 = vmatpush1.msra.mxu0 %v2066
        %2090 = vmatprep.subr.mxu0 %v2065
        %2091 = vmatpush1.msra.mxu0 %v2064
        %2092 = vmatprep.subr.mxu0 %v2063
        %2093 = vmatpush1.msra.mxu0 %v2062
        %2094 = vmatprep.subr.mxu0 %v2061
        %2095 = vmatpush1.msra.mxu0 %v2060
        %2096 = vmatprep.subr.mxu0 %v2059
        %2097 = vmatpush1.msra.mxu0 %v2058
        %2098 = vmatprep.subr.mxu0 %v2057
        %2099 = vmatpush1.msra.mxu0 %v2056
        %2100 = vmatprep.subr.mxu0 %v2055
        %2101 = vmatpush1.msra.mxu0 %v2054
        %2102 = vmatprep.subr.mxu0 %v2053
        %2103 = vmatpush1.msra.mxu0 %v2052
        %2104 = vmatprep.subr.mxu0 %v2051
        %2105 = vmatpush1.msra.mxu0 %v2050
        %2106 = vmatprep.subr.mxu0 %v2049
        %2107 = vmatpush1.msra.mxu0 %v2048
        %2108 = vmatprep.subr.mxu0 %v2047
        %2109 = vmatpush1.msra.mxu0 %v2046
        %2110 = vmatprep.subr.mxu0 0.0
        %2111 = vmatpush2.msra.mxu0 0.0
        %2112 = vmatprep.subr.mxu0 0.0
        %2113 = vmatpush2.msra.mxu0 0.0
        %2114 = vmatprep.subr.mxu0 0.0
        %2115 = vmatpush2.msra.mxu0 0.0
        %2116 = vmatprep.subr.mxu0 0.0
        %2117 = vmatpush2.msra.mxu0 0.0
        %2118 = vmatprep.subr.mxu0 0.0
        %2119 = vmatpush2.msra.mxu0 0.0
        %2120 = vmatprep.subr.mxu0 0.0
        %2121 = vmatpush2.msra.mxu0 0.0
        %2122 = vmatprep.subr.mxu0 0.0
        %2123 = vmatpush2.msra.mxu0 0.0
        %2124 = vmatprep.subr.mxu0 0.0
        %2125 = vmatpush2.msra.mxu0 0.0
        %2126 = vmatprep.subr.mxu0 0.0
        %2127 = vmatpush2.msra.mxu0 0.0
        %2128 = vmatprep.subr.mxu0 0.0
        %2129 = vmatpush2.msra.mxu0 0.0
        %2130 = vmatprep.subr.mxu0 0.0
        %2131 = vmatpush2.msra.mxu0 0.0
        %2132 = vmatprep.subr.mxu0 0.0
        %2133 = vmatpush2.msra.mxu0 0.0
        %2134 = vmatprep.subr.mxu0 0.0
        %2135 = vmatpush2.msra.mxu0 0.0
        %2136 = vmatprep.subr.mxu0 0.0
        %2137 = vmatpush2.msra.mxu0 0.0
        %2138 = vmatprep.subr.mxu0 0.0
        %2139 = vmatpush2.msra.mxu0 0.0
        %2140 = vmatprep.subr.mxu0 0.0
        %2141 = vmatpush2.msra.mxu0 0.0
        %2142 = vmatprep.mubr.f32.mxu0 0.0
        %2143 = vmatmul.mubr.f32.gmra.mxu0 %v2045
        %v2144 = vpop.f32.mrf.mxu0
        %v2145 = vadd.f32 0.0, %v2144
        %v2146 = vpop.f32.mrf.mxu0
        %v2147 = vadd.f32 0.0, %v2146
        %2148 = vdwg.mxu0
        %v2149 = vld [vmem:[%s690] sm:$0xff]
        %v2150 = vld [vmem:[%s690 + $0x8] sm:$0xff]
        %v2151 = vld [vmem:[%s690 + $0x10] sm:$0xff]
        %v2152 = vld [vmem:[%s690 + $0x18] sm:$0xff]
        %v2153 = vld [vmem:[%s690 + $0x20] sm:$0xff]
        %v2154 = vld [vmem:[%s690 + $0x28] sm:$0xff]
        %v2155 = vld [vmem:[%s690 + $0x30] sm:$0xff]
        %v2156 = vld [vmem:[%s690 + $0x38] sm:$0xff]
        %v2157 = vld [vmem:[%s690 + $0x40] sm:$0xff]
        %v2158 = vld [vmem:[%s690 + $0x48] sm:$0xff]
        %v2159 = vld [vmem:[%s690 + $0x50] sm:$0xff]
        %v2160 = vld [vmem:[%s690 + $0x58] sm:$0xff]
        %v2161 = vld [vmem:[%s690 + $0x60] sm:$0xff]
        %v2162 = vld [vmem:[%s690 + $0x68] sm:$0xff]
        %v2163 = vld [vmem:[%s690 + $0x70] sm:$0xff]
        %v2164 = vld [vmem:[%s690 + $0x78] sm:$0xff]
        %v2165 = vld [vmem:[%s690 + $0x80] sm:$0xff]
        %v2166 = vld [vmem:[%s690 + $0x88] sm:$0xff]
        %v2167 = vld [vmem:[%s690 + $0x90] sm:$0xff]
        %v2168 = vld [vmem:[%s690 + $0x98] sm:$0xff]
        %v2169 = vld [vmem:[%s690 + $0xa0] sm:$0xff]
        %v2170 = vld [vmem:[%s690 + $0xa8] sm:$0xff]
        %v2171 = vld [vmem:[%s690 + $0xb0] sm:$0xff]
        %v2172 = vld [vmem:[%s690 + $0xb8] sm:$0xff]
        %v2173 = vld [vmem:[%s690 + $0xc0] sm:$0xff]
        %v2174 = vld [vmem:[%s690 + $0xc8] sm:$0xff]
        %v2175 = vld [vmem:[%s690 + $0xd0] sm:$0xff]
        %v2176 = vld [vmem:[%s690 + $0xd8] sm:$0xff]
        %v2177 = vld [vmem:[%s690 + $0xe0] sm:$0xff]
        %v2178 = vld [vmem:[%s690 + $0xe8] sm:$0xff]
        %v2179 = vld [vmem:[%s690 + $0xf0] sm:$0xff]
        %v2180 = vld [vmem:[%s690 + $0xf8] sm:$0xff]
        %2181 = vmatprep.subr.mxu0 %v2180
        %2182 = vmatpush1.msra.mxu0 %v2179
        %2183 = vmatprep.subr.mxu0 %v2178
        %2184 = vmatpush1.msra.mxu0 %v2177
        %2185 = vmatprep.subr.mxu0 %v2176
        %2186 = vmatpush1.msra.mxu0 %v2175
        %2187 = vmatprep.subr.mxu0 %v2174
        %2188 = vmatpush1.msra.mxu0 %v2173
        %2189 = vmatprep.subr.mxu0 %v2172
        %2190 = vmatpush1.msra.mxu0 %v2171
        %2191 = vmatprep.subr.mxu0 %v2170
        %2192 = vmatpush1.msra.mxu0 %v2169
        %2193 = vmatprep.subr.mxu0 %v2168
        %2194 = vmatpush1.msra.mxu0 %v2167
        %2195 = vmatprep.subr.mxu0 %v2166
        %2196 = vmatpush1.msra.mxu0 %v2165
        %2197 = vmatprep.subr.mxu0 %v2164
        %2198 = vmatpush1.msra.mxu0 %v2163
        %2199 = vmatprep.subr.mxu0 %v2162
        %2200 = vmatpush1.msra.mxu0 %v2161
        %2201 = vmatprep.subr.mxu0 %v2160
        %2202 = vmatpush1.msra.mxu0 %v2159
        %2203 = vmatprep.subr.mxu0 %v2158
        %2204 = vmatpush1.msra.mxu0 %v2157
        %2205 = vmatprep.subr.mxu0 %v2156
        %2206 = vmatpush1.msra.mxu0 %v2155
        %2207 = vmatprep.subr.mxu0 %v2154
        %2208 = vmatpush1.msra.mxu0 %v2153
        %2209 = vmatprep.subr.mxu0 %v2152
        %2210 = vmatpush1.msra.mxu0 %v2151
        %2211 = vmatprep.subr.mxu0 %v2150
        %2212 = vmatpush1.msra.mxu0 %v2149
        %2213 = vmatprep.subr.mxu0 0.0
        %2214 = vmatpush2.msra.mxu0 0.0
        %2215 = vmatprep.subr.mxu0 0.0
        %2216 = vmatpush2.msra.mxu0 0.0
        %2217 = vmatprep.subr.mxu0 0.0
        %2218 = vmatpush2.msra.mxu0 0.0
        %2219 = vmatprep.subr.mxu0 0.0
        %2220 = vmatpush2.msra.mxu0 0.0
        %2221 = vmatprep.subr.mxu0 0.0
        %2222 = vmatpush2.msra.mxu0 0.0
        %2223 = vmatprep.subr.mxu0 0.0
        %2224 = vmatpush2.msra.mxu0 0.0
        %2225 = vmatprep.subr.mxu0 0.0
        %2226 = vmatpush2.msra.mxu0 0.0
        %2227 = vmatprep.subr.mxu0 0.0
        %2228 = vmatpush2.msra.mxu0 0.0
        %2229 = vmatprep.subr.mxu0 0.0
        %2230 = vmatpush2.msra.mxu0 0.0
        %2231 = vmatprep.subr.mxu0 0.0
        %2232 = vmatpush2.msra.mxu0 0.0
        %2233 = vmatprep.subr.mxu0 0.0
        %2234 = vmatpush2.msra.mxu0 0.0
        %2235 = vmatprep.subr.mxu0 0.0
        %2236 = vmatpush2.msra.mxu0 0.0
        %2237 = vmatprep.subr.mxu0 0.0
        %2238 = vmatpush2.msra.mxu0 0.0
        %2239 = vmatprep.subr.mxu0 0.0
        %2240 = vmatpush2.msra.mxu0 0.0
        %2241 = vmatprep.subr.mxu0 0.0
        %2242 = vmatpush2.msra.mxu0 0.0
        %2243 = vmatprep.subr.mxu0 0.0
        %2244 = vmatpush2.msra.mxu0 0.0
        %2245 = vmatprep.mubr.f32.mxu0 0.0
        %2246 = vmatmul.mubr.f32.gmra.mxu0 %v2045
        %v2247 = vpop.f32.mrf.mxu0
        %v2248 = vadd.f32 0.0, %v2247
        %v2249 = vpop.f32.mrf.mxu0
        %v2250 = vadd.f32 0.0, %v2249
        %2251 = vdwg.mxu0
        %v2252 = vxor.u32 %v2145, 2147483648
        %v2253 = vxor.u32 %v2147, 2147483648
        %v2254 = vmul.f32 %v2252, 1.442695
        %v2255 = vpow.pop %v2254
        %v2256 = vmul.f32 %v2253, 1.442695
        %v2257 = vpow.pop %v2256
        %v2258 = vadd.f32 %v2255, 1.0
        %v2259 = vadd.f32 %v2257, 1.0
        %v2260 = vrcp.pop %v2258
        %v2261 = vmul.f32 1.0, %v2260
        %v2262 = vrcp.pop %v2259
        %v2263 = vmul.f32 1.0, %v2262
        %v2264 = vmul.f32 %v2145, %v2261
        %v2265 = vmul.f32 %v2147, %v2263
        %v2266 = vmul.f32 %v2264, %v2248
        %v2267 = vmul.f32 %v2265, %v2250
        %v2268 = vld [vmem:[%s699] sm:$0xff]
        %v2269 = vld [vmem:[%s699 + $0x8] sm:$0xff]
        %v2270 = vld [vmem:[%s699 + $0x10] sm:$0xff]
        %v2271 = vld [vmem:[%s699 + $0x18] sm:$0xff]
        %v2272 = vld [vmem:[%s699 + $0x20] sm:$0xff]
        %v2273 = vld [vmem:[%s699 + $0x28] sm:$0xff]
        %v2274 = vld [vmem:[%s699 + $0x30] sm:$0xff]
        %v2275 = vld [vmem:[%s699 + $0x38] sm:$0xff]
        %v2276 = vld [vmem:[%s699 + $0x40] sm:$0xff]
        %v2277 = vld [vmem:[%s699 + $0x48] sm:$0xff]
        %v2278 = vld [vmem:[%s699 + $0x50] sm:$0xff]
        %v2279 = vld [vmem:[%s699 + $0x58] sm:$0xff]
        %v2280 = vld [vmem:[%s699 + $0x60] sm:$0xff]
        %v2281 = vld [vmem:[%s699 + $0x68] sm:$0xff]
        %v2282 = vld [vmem:[%s699 + $0x70] sm:$0xff]
        %v2283 = vld [vmem:[%s699 + $0x78] sm:$0xff]
        %v2284 = vld [vmem:[%s699 + $0x80] sm:$0xff]
        %v2285 = vld [vmem:[%s699 + $0x88] sm:$0xff]
        %v2286 = vld [vmem:[%s699 + $0x90] sm:$0xff]
        %v2287 = vld [vmem:[%s699 + $0x98] sm:$0xff]
        %v2288 = vld [vmem:[%s699 + $0xa0] sm:$0xff]
        %v2289 = vld [vmem:[%s699 + $0xa8] sm:$0xff]
        %v2290 = vld [vmem:[%s699 + $0xb0] sm:$0xff]
        %v2291 = vld [vmem:[%s699 + $0xb8] sm:$0xff]
        %v2292 = vld [vmem:[%s699 + $0xc0] sm:$0xff]
        %v2293 = vld [vmem:[%s699 + $0xc8] sm:$0xff]
        %v2294 = vld [vmem:[%s699 + $0xd0] sm:$0xff]
        %v2295 = vld [vmem:[%s699 + $0xd8] sm:$0xff]
        %v2296 = vld [vmem:[%s699 + $0xe0] sm:$0xff]
        %v2297 = vld [vmem:[%s699 + $0xe8] sm:$0xff]
        %v2298 = vld [vmem:[%s699 + $0xf0] sm:$0xff]
        %v2299 = vld [vmem:[%s699 + $0xf8] sm:$0xff]
        %2300 = vmatprep.subr.mxu0 0.0
        %2301 = vmatpush1.msra.mxu0 %v2283
        %2302 = vmatprep.subr.mxu0 0.0
        %2303 = vmatpush1.msra.mxu0 %v2282
        %2304 = vmatprep.subr.mxu0 0.0
        %2305 = vmatpush1.msra.mxu0 %v2281
        %2306 = vmatprep.subr.mxu0 0.0
        %2307 = vmatpush1.msra.mxu0 %v2280
        %2308 = vmatprep.subr.mxu0 0.0
        %2309 = vmatpush1.msra.mxu0 %v2279
        %2310 = vmatprep.subr.mxu0 0.0
        %2311 = vmatpush1.msra.mxu0 %v2278
        %2312 = vmatprep.subr.mxu0 0.0
        %2313 = vmatpush1.msra.mxu0 %v2277
        %2314 = vmatprep.subr.mxu0 0.0
        %2315 = vmatpush1.msra.mxu0 %v2276
        %2316 = vmatprep.subr.mxu0 0.0
        %2317 = vmatpush1.msra.mxu0 %v2275
        %2318 = vmatprep.subr.mxu0 0.0
        %2319 = vmatpush1.msra.mxu0 %v2274
        %2320 = vmatprep.subr.mxu0 0.0
        %2321 = vmatpush1.msra.mxu0 %v2273
        %2322 = vmatprep.subr.mxu0 0.0
        %2323 = vmatpush1.msra.mxu0 %v2272
        %2324 = vmatprep.subr.mxu0 0.0
        %2325 = vmatpush1.msra.mxu0 %v2271
        %2326 = vmatprep.subr.mxu0 0.0
        %2327 = vmatpush1.msra.mxu0 %v2270
        %2328 = vmatprep.subr.mxu0 0.0
        %2329 = vmatpush1.msra.mxu0 %v2269
        %2330 = vmatprep.subr.mxu0 0.0
        %2331 = vmatpush1.msra.mxu0 %v2268
        %2332 = vmatprep.subr.mxu0 0.0
        %2333 = vmatpush2.msra.mxu0 %v2299
        %2334 = vmatprep.subr.mxu0 0.0
        %2335 = vmatpush2.msra.mxu0 %v2298
        %2336 = vmatprep.subr.mxu0 0.0
        %2337 = vmatpush2.msra.mxu0 %v2297
        %2338 = vmatprep.subr.mxu0 0.0
        %2339 = vmatpush2.msra.mxu0 %v2296
        %2340 = vmatprep.subr.mxu0 0.0
        %2341 = vmatpush2.msra.mxu0 %v2295
        %2342 = vmatprep.subr.mxu0 0.0
        %2343 = vmatpush2.msra.mxu0 %v2294
        %2344 = vmatprep.subr.mxu0 0.0
        %2345 = vmatpush2.msra.mxu0 %v2293
        %2346 = vmatprep.subr.mxu0 0.0
        %2347 = vmatpush2.msra.mxu0 %v2292
        %2348 = vmatprep.subr.mxu0 0.0
        %2349 = vmatpush2.msra.mxu0 %v2291
        %2350 = vmatprep.subr.mxu0 0.0
        %2351 = vmatpush2.msra.mxu0 %v2290
        %2352 = vmatprep.subr.mxu0 0.0
        %2353 = vmatpush2.msra.mxu0 %v2289
        %2354 = vmatprep.subr.mxu0 0.0
        %2355 = vmatpush2.msra.mxu0 %v2288
        %2356 = vmatprep.subr.mxu0 0.0
        %2357 = vmatpush2.msra.mxu0 %v2287
        %2358 = vmatprep.subr.mxu0 0.0
        %2359 = vmatpush2.msra.mxu0 %v2286
        %2360 = vmatprep.subr.mxu0 0.0
        %2361 = vmatpush2.msra.mxu0 %v2285
        %2362 = vmatprep.subr.mxu0 0.0
        %2363 = vmatpush2.msra.mxu0 %v2284
        %2364 = vmatprep.mubr.f32.mxu0 %v2267
        %2365 = vmatmul.mubr.f32.gmra.mxu0 %v2266
        %v2366 = vpop.f32.mrf.mxu0
        %v2367 = vadd.f32 0.0, %v2366
        %v2368 = vpop.f32.mrf.mxu0
        %2369 = vdwg.mxu0
        %2370 = vst [vmem:[#allocation2] sm:$0xff] %v2367
        %p2371 = scmp.eq.s32.totalorder %s38, 1
        // Predicated region
        $region125: #{tpu_custom_call.1} parent=87 // pred_check
          %p2372 = pneg %p2371
        $region126: #{tpu_custom_call.1} parent=87 // pred_check_branch
          %2374 = sbr.rel (%p2372) target = $region128
        $region127: #{tpu_custom_call.1} parent=87 // pred_region
          %v2375 = vadd.f32 %v2367, %v2027
          %v2376 = vld [vmem:[%s16] sm:$0x1]
          %v2377 = vmul.f32 %v2375, %v2375
          %2378 = vadd.xlane.f32.xlu0 %v2377
          %v2379 = vpop.xlane.xlu0 %2378
          %v2380 = vmul.f32 %v2379, %v822
          %v2381 = vadd.f32 %v2380, 1e-05
          %v2382 = vrsqrt.pop %v2381
          %v2383 = vmul.f32 %v2375, %v2382
          %v2385 = vlaneseq
          %v2386 = vshrl.u32 %v2385, 7
          %v2387 = vsub.s32 0, %v2386
          %v2388 = vrot.slane %v2376, %v2387
          %v2390 = vmul.f32 %v2383, %v2388
          %2391 = vst [vmem:[#allocation18] sm:$0xff] %v2390
        $region128: #{tpu_custom_call.1} parent=87 // pred_fallthru
          _
        // Predicated region
        $region129: #{tpu_custom_call.1} parent=87 // pred_check
          %p2392 = pneg %p453
        $region130: #{tpu_custom_call.1} parent=87 // pred_check_branch
          %2394 = sbr.rel (%p2392) target = $region132
        $region131: #{tpu_custom_call.1} parent=87 // pred_region
          %s2396 = ssub.s32 128, 128
          %2397 = vsyncadd [#allocation6], %s2396
          %s2399 = sshll.u32 [#allocation18], 4
          %s2400 = int_to_ptr.vmem [resolvable:$true] %s2399
          %2402 = dma.vmem_to_hbm [thread:$0]  %s2400, 128, %s17, [#allocation6]
        $region132: #{tpu_custom_call.1} parent=87 // pred_fallthru
          _
        // Predicated region
        $region133: #{tpu_custom_call.1} parent=87 // pred_check
          %p2403 = pneg %p453
        $region134: #{tpu_custom_call.1} parent=87 // pred_check_branch
          %2405 = sbr.rel (%p2403) target = $region136
        $region135: #{tpu_custom_call.1} parent=87 // pred_region
          %2406 = dma.done [#allocation6], 128
        $region136: #{tpu_custom_call.1} parent=87 // pred_fallthru
          _
      $region88: #{tpu_custom_call.1} parent=5 // pred_fallthru
        _
      %p2407 = scmp.le.s32.totalorder 2, %s33
      // Predicated region
      $region137: #{tpu_custom_call.1} parent=5 // pred_check
        %p2408 = pneg %p2407
      $region138: #{tpu_custom_call.1} parent=5 // pred_check_branch
        %2410 = sbr.rel (%p2408) target = $region140
      $region139: #{tpu_custom_call.1} parent=5 // pred_region
        %s2411 = ssub.s32 %s33, 2
      $region140: #{tpu_custom_call.1} parent=5 // pred_fallthru
        _
    $region6: #{tpu_custom_call.1} parent=1 // loop_footer
      %s37 = sadd.s32 1, %s33
    $region7: #{tpu_custom_call.1} parent=1 // loop_footer_branch
      %32 = sbr.rel target = $region3
    $region8: #{tpu_custom_call.1} parent=1 // loop_exit
      _
    %2412 = vsyncpa [#allocation5], 1
    %s2413 = scalar_lea.sflag [#allocation5], 1
    %2414 = vsyncpa %s2413, 1
    %2415 = vsyncpa [#allocation8], 1
    %2416 = vsyncpa [#allocation11], 1
    %2417 = vsyncpa [#allocation14], 1
    %s2418 = scalar_lea.sflag [#allocation14], 1
    %2419 = vsyncpa %s2418, 1
    %2420 = vsyncpa [#allocation17], 1
    %s2421 = scalar_lea.sflag [#allocation17], 1
    %2422 = vsyncpa %s2421, 1
    %2423 = vsyncpa [#allocation6], 1
    %s2424 = scalar_lea.sflag [#allocation6], 1
    %2425 = vsyncpa %s2424, 1

</llo_original>
